<compile_context>
chip_gen: v7x
topology: tpu7x:2x2x1
jax: 0.10.0
libtpu: 0.0.40
codegen_flags: <defaults>
</compile_context>

<pallas_src>
import functools

import jax
import jax.numpy as jnp
from jax import lax
from jax.experimental import pallas as pl
from jax.experimental.pallas import tpu as pltpu


# ----------------------------------------------------------------------------- #
# Static per-layer geometry for the fused block kernel
# ----------------------------------------------------------------------------- #
def _layer_cfgs(layers, H0):
    cfgs, H = [], H0
    for layer in layers:
        K, Cin, Cout = layer["w"].shape
        s, p = int(layer["stride"]), int(layer["pad"])
        H_out = (H + 2 * p - K) // s + 1
        Hp = (H_out - 1) * s + K          # padded rows actually read by the taps
        right = Hp - p - H                # bottom zero rows (subset of torch's pad)
        assert H_out > 0 and right >= 0, "unsupported conv geometry"
        cfgs.append(dict(K=K, Cin=Cin, Cout=Cout, s=s, p=p, act=bool(layer["act"]),
                         H_in=H, H_out=H_out, Hp=Hp, right=right))
        H = H_out
    return cfgs


# ----------------------------------------------------------------------------- #
# Fused MPD-block kernel: all conv layers of one block in a single pallas_call.
# Per grid step: TILE_N (batch, period-phase) columns, full H resident in VMEM.
# ----------------------------------------------------------------------------- #
def _mpd_block_kernel(*refs, cfgs, tile_n, leak):
    L = len(cfgs)
    x_ref = refs[0]                          # (H0, TILE_N)          f32
    w_refs = refs[1:1 + L]                   # (K, T*Cin, T*Cout)    block-diagonal
    b_refs = refs[1 + L:1 + 2 * L]           # (1, T*Cout)           f32
    out_refs = refs[1 + 2 * L:1 + 3 * L]     # (H_out_l, T*Cout_l)   f32
    xp_refs = refs[1 + 3 * L:1 + 4 * L]      # VMEM scratch: padded layer inputs

    cur = x_ref[...]                         # layer-0 input, Cin = 1
    for l, cfg in enumerate(cfgs):
        K = cfg["K"]
        s, p, right = cfg["s"], cfg["p"], cfg["right"]
        H_in, H_out = cfg["H_in"], cfg["H_out"]
        Ci = tile_n * cfg["Cin"]
        Co = tile_n * cfg["Cout"]

        # zero-pad along H directly in VMEM (re-zeroed per step; see header note)
        xp = xp_refs[l]
        if p > 0:
            xp[pl.ds(0, p), :] = jnp.zeros((p, Ci), jnp.float32)
        if right > 0:
            xp[pl.ds(p + H_in, right), :] = jnp.zeros((right, Ci), jnp.float32)
        xp[pl.ds(p, H_in), :] = cur

        b = b_refs[l][...]
        acc = jnp.zeros((H_out, Co), jnp.float32)
        for kh in range(K):
            # stride folded into the tap read: only the needed rows are touched
            if s > 1:
                tap = xp[pl.ds(kh, H_out, stride=s), :]
            else:
                tap = xp[pl.ds(kh, H_out), :]
            wk = w_refs[l][kh]                                   # (T*Cin, T*Cout)
            acc = acc + jnp.dot(tap.astype(wk.dtype), wk,
                                preferred_element_type=jnp.float32)

        y = acc + b
        if cfg["act"]:
            y = jnp.where(y > 0.0, y, leak * y)                  # LeakyReLU

        out_refs[l][...] = y                                     # lane-dense store
        cur = y                                                  # stays in VMEM


def mpd_block_pallas(x_tiles, layers, leak, tile_n, use_bf16=False):
    """x_tiles: (num_tiles, H0, TILE_N) f32 -> per-layer outputs
       [(num_tiles, H_out_l, TILE_N * Cout_l), ...]."""
    num_tiles, H0, _ = x_tiles.shape
    cfgs = _layer_cfgs(layers, H0)
    L = len(cfgs)
    wdtype = jnp.bfloat16 if use_bf16 else jnp.float32

    # Block-diagonal weights (hoisted out of the kernel; built once per call).
    eye = jnp.eye(tile_n, dtype=jnp.float32)
    w_blk, b_blk = [], []
    for l, cfg in enumerate(cfgs):
        w = layers[l]["w"]                                        # (K, Cin, Cout)
        wb = jnp.stack([jnp.kron(eye, w[kh]) for kh in range(cfg["K"])], axis=0)
        w_blk.append(wb.astype(wdtype))                           # (K, T*Cin, T*Cout)
        b_blk.append(jnp.tile(layers[l]["b"], tile_n)
                     .reshape(1, tile_n * cfg["Cout"]).astype(jnp.float32))

    in_specs = [pl.BlockSpec((None, H0, tile_n), lambda i: (i, 0, 0))]
    in_specs += [pl.BlockSpec(wb.shape, lambda i: (0, 0, 0)) for wb in w_blk]
    in_specs += [pl.BlockSpec(bb.shape, lambda i: (0, 0)) for bb in b_blk]

    out_specs = tuple(
        pl.BlockSpec((None, cfg["H_out"], tile_n * cfg["Cout"]), lambda i: (i, 0, 0))
        for cfg in cfgs)
    out_shape = tuple(
        jax.ShapeDtypeStruct((num_tiles, cfg["H_out"], tile_n * cfg["Cout"]),
                             jnp.float32)
        for cfg in cfgs)
    scratch_shapes = [pltpu.VMEM((cfg["Hp"], tile_n * cfg["Cin"]), jnp.float32)
                      for cfg in cfgs]

    flops = int(2 * num_tiles * sum(
        cfg["K"] * cfg["H_out"] * (tile_n * cfg["Cin"]) * (tile_n * cfg["Cout"])
        for cfg in cfgs))
    bytes_accessed = int(
        x_tiles.size * 4
        + sum(int(w.size) * int(w.dtype.itemsize) for w in w_blk)
        + sum(int(b.size) * 4 for b in b_blk)
        + num_tiles * sum(cfg["H_out"] * tile_n * cfg["Cout"] * 4 for cfg in cfgs))

    kernel = functools.partial(_mpd_block_kernel, cfgs=tuple(cfgs),
                               tile_n=tile_n, leak=leak)

    outs = pl.pallas_call(
        kernel,
        out_shape=out_shape,
        grid=(num_tiles,),                       # sharded across TCs on v7x
        in_specs=in_specs,
        out_specs=out_specs,
        scratch_shapes=scratch_shapes,
        compiler_params=pltpu.CompilerParams(dimension_semantics=("parallel",)),
        cost_estimate=pl.CostEstimate(flops=flops, transcendentals=0,
                                      bytes_accessed=bytes_accessed),
    )(x_tiles, *w_blk, *b_blk)
    return list(outs), cfgs


# ----------------------------------------------------------------------------- #
# Parameter setup (deterministic, weight-norm reparam resolved at init time)
# ----------------------------------------------------------------------------- #
def _wn_conv_init(key, cin, cout, k):
    kv, kg, kb = jax.random.split(key, 3)
    v = jax.random.normal(kv, (cout, cin, k), dtype=jnp.float32) * 0.1
    g = jax.random.uniform(kg, (cout,), dtype=jnp.float32, minval=0.5, maxval=1.5)
    norm = jnp.sqrt(jnp.sum(v * v, axis=(1, 2)) + 1e-12)
    w = v * (g / norm)[:, None, None]                    # effective weight (Cout,Cin,K)
    b = jax.random.normal(kb, (cout,), dtype=jnp.float32) * 0.01
    return {"w": jnp.transpose(w, (2, 1, 0)), "b": b}    # stored as (K, Cin, Cout)


def init_mpd_block_params(key, kernel_size, stride, channels):
    pairs = list(zip(channels, channels[1:])) + [(channels[-1], channels[-1])]
    strides = [stride] * (len(channels) - 1) + [1]
    keys = jax.random.split(key, len(pairs) + 1)
    layers = []
    for i, (cin, cout) in enumerate(pairs):
        p = _wn_conv_init(keys[i], cin, cout, kernel_size)
        p.update(stride=strides[i], pad=2, act=True)
        layers.append(p)
    out_p = _wn_conv_init(keys[len(pairs)], channels[-1], 1, 3)
    out_p.update(stride=1, pad=1, act=False)
    layers.append(out_p)
    return layers


# ----------------------------------------------------------------------------- #
# MPDBlock / MPD forward
# ----------------------------------------------------------------------------- #
def mpd_block_forward(wav, layers, period, leak, tile_n=8, use_bf16=False):
    x = jnp.squeeze(wav)
    if x.ndim == 1:
        x = x[None, :]
    B, T = x.shape
    if T % period != 0:
        x = jnp.pad(x, ((0, 0), (0, period - T % period)), mode="reflect")
        T = x.shape[-1]
    H = T // period
    N = B * period

    # column n = b*period + w carries x[b, h*period + w]  ->  (N, H)
    cols = jnp.transpose(x.reshape(B, H, period), (0, 2, 1)).reshape(N, H)
    num_tiles = pl.cdiv(N, tile_n)
    N_pad = num_tiles * tile_n
    if N_pad != N:
        cols = jnp.pad(cols, ((0, N_pad - N), (0, 0)))           # zero columns, dropped later
    # (num_tiles, H, TILE_N): columns on the lane axis
    x_tiles = jnp.transpose(cols.reshape(num_tiles, tile_n, H), (0, 2, 1))

    layer_outs, cfgs = mpd_block_pallas(x_tiles, layers, leak, tile_n, use_bf16)

    fms = []
    for y, cfg in zip(layer_outs, cfgs):
        Ho, Co = cfg["H_out"], cfg["Cout"]
        y = y.reshape(num_tiles, Ho, tile_n, Co)
        y = jnp.transpose(y, (0, 2, 1, 3)).reshape(N_pad, Ho, Co)[:N]
        fm = jnp.transpose(y.reshape(B, period, Ho, Co), (0, 3, 2, 1))   # NCHW
        fms.append(fm)
    out = fms[-1].reshape(B, -1)                                 # torch.flatten(x, 1, -1)
    return out, fms


def mpd_forward(target_wav, generated_wav, blocks_params, periods, leak,
                tile_n=8, use_bf16=False):
    t_outs, g_outs, t_fms, g_fms = [], [], [], []
    for layers, period in zip(blocks_params, periods):
        to, tf = mpd_block_forward(target_wav, layers, period, leak, tile_n, use_bf16)
        go, gf = mpd_block_forward(generated_wav, layers, period, leak, tile_n, use_bf16)
        t_outs.append(to)
        g_outs.append(go)
        t_fms.append(tf)
        g_fms.append(gf)
    return t_outs, g_outs, t_fms, g_fms


# ----------------------------------------------------------------------------- #
# Pure-JAX reference (for verification only)
# ----------------------------------------------------------------------------- #
def _ref_block_forward(wav, layers, period, leak):
    x = jnp.squeeze(wav)
    if x.ndim == 1:
        x = x[None, :]
    B, T = x.shape
    if T % period != 0:
        x = jnp.pad(x, ((0, 0), (0, period - T % period)), mode="reflect")
        T = x.shape[-1]
    x = x.reshape(B, 1, T // period, period)
    fms = []
    for layer in layers:
        w = jnp.transpose(layer["w"], (2, 1, 0))[..., None]      # (Cout, Cin, K, 1)
        y = lax.conv_general_dilated(
            x, w, window_strides=(layer["stride"], 1),
            padding=((layer["pad"], layer["pad"]), (0, 0)),
            dimension_numbers=("NCHW", "OIHW", "NCHW"),
            precision=lax.Precision.HIGHEST)
        y = y + layer["b"][None, :, None, None]
        if layer["act"]:
            y = jnp.where(y > 0.0, y, leak * y)
        x = y
        fms.append(y)
    return x.reshape(B, -1), fms


if __name__ == "__main__":
    kernel_size, stride, relu_leakage = 5, 3, 0.1
    periods = [2, 3]
    channels = [1, 8, 16]
    B, T = 4, 190
    TILE_N = 8

    root = jax.random.PRNGKey(0)
    k_t, k_g, k_p = jax.random.split(root, 3)
    target_wav = jax.random.normal(k_t, (B, 1, T), dtype=jnp.float32)
    generated_wav = jax.random.normal(k_g, (B, 1, T), dtype=jnp.float32)

    block_keys = jax.random.split(k_p, len(periods))
    blocks_params = [init_mpd_block_params(bk, kernel_size, stride, channels)
                     for bk in block_keys]

    outs = mpd_forward(target_wav, generated_wav, blocks_params, periods,
                       relu_leakage, tile_n=TILE_N)
    jax.block_until_ready(outs)

    # verify against pure-JAX reference (f32 path -> tight tolerance)
    ATOL = RTOL = 1e-4
    t_outs, g_outs, t_fms, g_fms = outs
    for i, period in enumerate(periods):
        ref_out, ref_fms = _ref_block_forward(target_wav, blocks_params[i],
                                              period, relu_leakage)
        assert t_outs[i].shape == ref_out.shape
        assert bool(jnp.allclose(t_outs[i], ref_out, atol=ATOL, rtol=RTOL))
        for fm, rfm in zip(t_fms[i], ref_fms):
            assert fm.shape == rfm.shape
            assert bool(jnp.allclose(fm, rfm, atol=ATOL, rtol=RTOL))
        ref_gout, ref_gfms = _ref_block_forward(generated_wav, blocks_params[i],
                                                period, relu_leakage)
        assert bool(jnp.allclose(g_outs[i], ref_gout, atol=ATOL, rtol=RTOL))
        for fm, rfm in zip(g_fms[i], ref_gfms):
            assert bool(jnp.allclose(fm, rfm, atol=ATOL, rtol=RTOL))

    print("KERNEL_OK")
</pallas_src>

<mosaic_0001>
module attributes {stable_mosaic.version = 11 : i64} {
  func.func @_mpd_block_kernel(%arg0: i32, %arg1: memref<1x95x8xf32, #tpu.memory_space<vmem>>, %arg2: memref<5x8x64xf32, #tpu.memory_space<vmem>>, %arg3: memref<5x64x128xf32, #tpu.memory_space<vmem>>, %arg4: memref<5x128x128xf32, #tpu.memory_space<vmem>>, %arg5: memref<3x128x8xf32, #tpu.memory_space<vmem>>, %arg6: memref<1x64xf32, #tpu.memory_space<vmem>>, %arg7: memref<1x128xf32, #tpu.memory_space<vmem>>, %arg8: memref<1x128xf32, #tpu.memory_space<vmem>>, %arg9: memref<1x8xf32, #tpu.memory_space<vmem>>, %arg10: memref<1x32x64xf32, #tpu.memory_space<vmem>>, %arg11: memref<1x11x128xf32, #tpu.memory_space<vmem>>, %arg12: memref<1x11x128xf32, #tpu.memory_space<vmem>>, %arg13: memref<1x11x8xf32, #tpu.memory_space<vmem>>, %arg14: memref<98x8xf32, #tpu.memory_space<vmem>>, %arg15: memref<35x64xf32, #tpu.memory_space<vmem>>, %arg16: memref<15x128xf32, #tpu.memory_space<vmem>>, %arg17: memref<13x128xf32, #tpu.memory_space<vmem>>) attributes {dimension_semantics = [#tpu.dimension_semantics<parallel>], iteration_bounds = array<i64: 1>, scalar_prefetch = 0 : i64, scratch_operands = 4 : i64, tpu.core_type = #tpu.core_type<tc>, window_params = [{transform_indices = @transform_0, window_bounds = array<i64: 1, 95, 8>}, {pipeline_mode = #tpu.pipeline_mode<synchronous>, transform_indices = @transform_1, window_bounds = array<i64: 5, 8, 64>}, {pipeline_mode = #tpu.pipeline_mode<synchronous>, transform_indices = @transform_2, window_bounds = array<i64: 5, 64, 128>}, {pipeline_mode = #tpu.pipeline_mode<synchronous>, transform_indices = @transform_3, window_bounds = array<i64: 5, 128, 128>}, {pipeline_mode = #tpu.pipeline_mode<synchronous>, transform_indices = @transform_4, window_bounds = array<i64: 3, 128, 8>}, {pipeline_mode = #tpu.pipeline_mode<synchronous>, transform_indices = @transform_5, window_bounds = array<i64: 1, 64>}, {pipeline_mode = #tpu.pipeline_mode<synchronous>, transform_indices = @transform_6, window_bounds = array<i64: 1, 128>}, {pipeline_mode = #tpu.pipeline_mode<synchronous>, transform_indices = @transform_7, window_bounds = array<i64: 1, 128>}, {pipeline_mode = #tpu.pipeline_mode<synchronous>, transform_indices = @transform_8, window_bounds = array<i64: 1, 8>}, {transform_indices = @transform_9, window_bounds = array<i64: 1, 32, 64>}, {transform_indices = @transform_10, window_bounds = array<i64: 1, 11, 128>}, {transform_indices = @transform_11, window_bounds = array<i64: 1, 11, 128>}, {transform_indices = @transform_12, window_bounds = array<i64: 1, 11, 8>}]} {
    %c0 = arith.constant 0 : index
    %c0_0 = arith.constant 0 : index
    %c0_1 = arith.constant 0 : index
    %0 = vector.load %arg1[%c0, %c0_0, %c0_1] : memref<1x95x8xf32, #tpu.memory_space<vmem>>, vector<1x95x8xf32>
    %1 = vector.shape_cast %0 : vector<1x95x8xf32> to vector<95x8xf32>
    %cst = arith.constant 0.000000e+00 : f32
    %2 = vector.broadcast %cst : f32 to vector<2x8xf32>
    %c0_2 = arith.constant 0 : index
    %c0_3 = arith.constant 0 : index
    %3 = vector.load %arg14[%c0_2, %c0_3] : memref<98x8xf32, #tpu.memory_space<vmem>>, vector<2x8xf32>
    tpu.vector_store %arg14[%c0_2, %c0_3], %2 {strides = array<i32>} : memref<98x8xf32, #tpu.memory_space<vmem>>, vector<2x8xf32>,
    %cst_4 = arith.constant 0.000000e+00 : f32
    %4 = vector.broadcast %cst_4 : f32 to vector<1x8xf32>
    %c97 = arith.constant 97 : index
    %c0_5 = arith.constant 0 : index
    %5 = vector.load %arg14[%c97, %c0_5] : memref<98x8xf32, #tpu.memory_space<vmem>>, vector<1x8xf32>
    tpu.vector_store %arg14[%c97, %c0_5], %4 {strides = array<i32>} : memref<98x8xf32, #tpu.memory_space<vmem>>, vector<1x8xf32>,
    %c2 = arith.constant 2 : index
    %c0_6 = arith.constant 0 : index
    %6 = vector.load %arg14[%c2, %c0_6] : memref<98x8xf32, #tpu.memory_space<vmem>>, vector<95x8xf32>
    tpu.vector_store %arg14[%c2, %c0_6], %1 {strides = array<i32>} : memref<98x8xf32, #tpu.memory_space<vmem>>, vector<95x8xf32>,
    %c0_7 = arith.constant 0 : index
    %c0_8 = arith.constant 0 : index
    %7 = vector.load %arg6[%c0_7, %c0_8] : memref<1x64xf32, #tpu.memory_space<vmem>>, vector<1x64xf32>
    %cst_9 = arith.constant 0.000000e+00 : f32
    %8 = vector.broadcast %cst_9 : f32 to vector<32x64xf32>
    %c0_10 = arith.constant 0 : index
    %c0_11 = arith.constant 0 : index
    %9 = tpu.strided_load %arg14[%c0_10, %c0_11] {strides = array<i32: 3, 1>} : memref<98x8xf32, #tpu.memory_space<vmem>>, vector<32x8xf32>
    %c0_12 = arith.constant 0 : index
    %c0_13 = arith.constant 0 : index
    %c0_14 = arith.constant 0 : index
    %10 = vector.load %arg2[%c0_12, %c0_13, %c0_14] : memref<5x8x64xf32, #tpu.memory_space<vmem>>, vector<1x8x64xf32>
    %11 = vector.shape_cast %10 : vector<1x8x64xf32> to vector<8x64xf32>
    %cst_15 = arith.constant dense<0.000000e+00> : vector<32x64xf32>
    %12 = tpu.matmul %9, %11, %cst_15 {dimension_numbers = #tpu.dot_dimension_numbers<[1], [0], [0], [1], [0, 0, 1, 1], [], []>} : vector<32x8xf32>, vector<8x64xf32>, vector<32x64xf32> -> vector<32x64xf32>
    %13 = arith.addf %8, %12 : vector<32x64xf32>
    %c1 = arith.constant 1 : index
    %c0_16 = arith.constant 0 : index
    %14 = tpu.strided_load %arg14[%c1, %c0_16] {strides = array<i32: 3, 1>} : memref<98x8xf32, #tpu.memory_space<vmem>>, vector<32x8xf32>
    %c1_17 = arith.constant 1 : index
    %c0_18 = arith.constant 0 : index
    %c0_19 = arith.constant 0 : index
    %15 = vector.load %arg2[%c1_17, %c0_18, %c0_19] : memref<5x8x64xf32, #tpu.memory_space<vmem>>, vector<1x8x64xf32>
    %16 = vector.shape_cast %15 : vector<1x8x64xf32> to vector<8x64xf32>
    %cst_20 = arith.constant dense<0.000000e+00> : vector<32x64xf32>
    %17 = tpu.matmul %14, %16, %cst_20 {dimension_numbers = #tpu.dot_dimension_numbers<[1], [0], [0], [1], [0, 0, 1, 1], [], []>} : vector<32x8xf32>, vector<8x64xf32>, vector<32x64xf32> -> vector<32x64xf32>
    %18 = arith.addf %13, %17 : vector<32x64xf32>
    %c2_21 = arith.constant 2 : index
    %c0_22 = arith.constant 0 : index
    %19 = tpu.strided_load %arg14[%c2_21, %c0_22] {strides = array<i32: 3, 1>} : memref<98x8xf32, #tpu.memory_space<vmem>>, vector<32x8xf32>
    %c2_23 = arith.constant 2 : index
    %c0_24 = arith.constant 0 : index
    %c0_25 = arith.constant 0 : index
    %20 = vector.load %arg2[%c2_23, %c0_24, %c0_25] : memref<5x8x64xf32, #tpu.memory_space<vmem>>, vector<1x8x64xf32>
    %21 = vector.shape_cast %20 : vector<1x8x64xf32> to vector<8x64xf32>
    %cst_26 = arith.constant dense<0.000000e+00> : vector<32x64xf32>
    %22 = tpu.matmul %19, %21, %cst_26 {dimension_numbers = #tpu.dot_dimension_numbers<[1], [0], [0], [1], [0, 0, 1, 1], [], []>} : vector<32x8xf32>, vector<8x64xf32>, vector<32x64xf32> -> vector<32x64xf32>
    %23 = arith.addf %18, %22 : vector<32x64xf32>
    %c3 = arith.constant 3 : index
    %c0_27 = arith.constant 0 : index
    %24 = tpu.strided_load %arg14[%c3, %c0_27] {strides = array<i32: 3, 1>} : memref<98x8xf32, #tpu.memory_space<vmem>>, vector<32x8xf32>
    %c3_28 = arith.constant 3 : index
    %c0_29 = arith.constant 0 : index
    %c0_30 = arith.constant 0 : index
    %25 = vector.load %arg2[%c3_28, %c0_29, %c0_30] : memref<5x8x64xf32, #tpu.memory_space<vmem>>, vector<1x8x64xf32>
    %26 = vector.shape_cast %25 : vector<1x8x64xf32> to vector<8x64xf32>
    %cst_31 = arith.constant dense<0.000000e+00> : vector<32x64xf32>
    %27 = tpu.matmul %24, %26, %cst_31 {dimension_numbers = #tpu.dot_dimension_numbers<[1], [0], [0], [1], [0, 0, 1, 1], [], []>} : vector<32x8xf32>, vector<8x64xf32>, vector<32x64xf32> -> vector<32x64xf32>
    %28 = arith.addf %23, %27 : vector<32x64xf32>
    %c4 = arith.constant 4 : index
    %c0_32 = arith.constant 0 : index
    %29 = tpu.strided_load %arg14[%c4, %c0_32] {strides = array<i32: 3, 1>} : memref<98x8xf32, #tpu.memory_space<vmem>>, vector<32x8xf32>
    %c4_33 = arith.constant 4 : index
    %c0_34 = arith.constant 0 : index
    %c0_35 = arith.constant 0 : index
    %30 = vector.load %arg2[%c4_33, %c0_34, %c0_35] : memref<5x8x64xf32, #tpu.memory_space<vmem>>, vector<1x8x64xf32>
    %31 = vector.shape_cast %30 : vector<1x8x64xf32> to vector<8x64xf32>
    %cst_36 = arith.constant dense<0.000000e+00> : vector<32x64xf32>
    %32 = tpu.matmul %29, %31, %cst_36 {dimension_numbers = #tpu.dot_dimension_numbers<[1], [0], [0], [1], [0, 0, 1, 1], [], []>} : vector<32x8xf32>, vector<8x64xf32>, vector<32x64xf32> -> vector<32x64xf32>
    %33 = arith.addf %28, %32 : vector<32x64xf32>
    %34 = vector.broadcast %7 : vector<1x64xf32> to vector<32x64xf32>
    %35 = arith.addf %33, %34 : vector<32x64xf32>
    %cst_37 = arith.constant 0.000000e+00 : f32
    %36 = vector.broadcast %cst_37 : f32 to vector<32x64xf32>
    %37 = arith.cmpf ogt, %35, %36 : vector<32x64xf32>
    %cst_38 = arith.constant 1.000000e-01 : f32
    %38 = vector.broadcast %cst_38 : f32 to vector<32x64xf32>
    %39 = arith.mulf %38, %35 : vector<32x64xf32>
    %40 = arith.select %37, %35, %39 : vector<32x64xi1>, vector<32x64xf32>
    %c0_39 = arith.constant 0 : index
    %c0_40 = arith.constant 0 : index
    %c0_41 = arith.constant 0 : index
    %41 = vector.load %arg10[%c0_39, %c0_40, %c0_41] : memref<1x32x64xf32, #tpu.memory_space<vmem>>, vector<1x32x64xf32>
    %42 = vector.shape_cast %41 : vector<1x32x64xf32> to vector<32x64xf32>
    %43 = vector.shape_cast %40 : vector<32x64xf32> to vector<1x32x64xf32>
    tpu.vector_store %arg10[%c0_39, %c0_40, %c0_41], %43 {strides = array<i32>} : memref<1x32x64xf32, #tpu.memory_space<vmem>>, vector<1x32x64xf32>,
    %cst_42 = arith.constant 0.000000e+00 : f32
    %44 = vector.broadcast %cst_42 : f32 to vector<2x64xf32>
    %c0_43 = arith.constant 0 : index
    %c0_44 = arith.constant 0 : index
    %45 = vector.load %arg15[%c0_43, %c0_44] : memref<35x64xf32, #tpu.memory_space<vmem>>, vector<2x64xf32>
    tpu.vector_store %arg15[%c0_43, %c0_44], %44 {strides = array<i32>} : memref<35x64xf32, #tpu.memory_space<vmem>>, vector<2x64xf32>,
    %cst_45 = arith.constant 0.000000e+00 : f32
    %46 = vector.broadcast %cst_45 : f32 to vector<1x64xf32>
    %c34 = arith.constant 34 : index
    %c0_46 = arith.constant 0 : index
    %47 = vector.load %arg15[%c34, %c0_46] : memref<35x64xf32, #tpu.memory_space<vmem>>, vector<1x64xf32>
    tpu.vector_store %arg15[%c34, %c0_46], %46 {strides = array<i32>} : memref<35x64xf32, #tpu.memory_space<vmem>>, vector<1x64xf32>,
    %c2_47 = arith.constant 2 : index
    %c0_48 = arith.constant 0 : index
    %48 = vector.load %arg15[%c2_47, %c0_48] : memref<35x64xf32, #tpu.memory_space<vmem>>, vector<32x64xf32>
    tpu.vector_store %arg15[%c2_47, %c0_48], %40 {strides = array<i32>} : memref<35x64xf32, #tpu.memory_space<vmem>>, vector<32x64xf32>,
    %c0_49 = arith.constant 0 : index
    %c0_50 = arith.constant 0 : index
    %49 = vector.load %arg7[%c0_49, %c0_50] : memref<1x128xf32, #tpu.memory_space<vmem>>, vector<1x128xf32>
    %cst_51 = arith.constant 0.000000e+00 : f32
    %50 = vector.broadcast %cst_51 : f32 to vector<11x128xf32>
    %c0_52 = arith.constant 0 : index
    %c0_53 = arith.constant 0 : index
    %51 = tpu.strided_load %arg15[%c0_52, %c0_53] {strides = array<i32: 3, 1>} : memref<35x64xf32, #tpu.memory_space<vmem>>, vector<11x64xf32>
    %c0_54 = arith.constant 0 : index
    %c0_55 = arith.constant 0 : index
    %c0_56 = arith.constant 0 : index
    %52 = vector.load %arg3[%c0_54, %c0_55, %c0_56] : memref<5x64x128xf32, #tpu.memory_space<vmem>>, vector<1x64x128xf32>
    %53 = vector.shape_cast %52 : vector<1x64x128xf32> to vector<64x128xf32>
    %cst_57 = arith.constant dense<0.000000e+00> : vector<11x128xf32>
    %54 = tpu.matmul %51, %53, %cst_57 {dimension_numbers = #tpu.dot_dimension_numbers<[1], [0], [0], [1], [0, 0, 1, 1], [], []>} : vector<11x64xf32>, vector<64x128xf32>, vector<11x128xf32> -> vector<11x128xf32>
    %55 = arith.addf %50, %54 : vector<11x128xf32>
    %c1_58 = arith.constant 1 : index
    %c0_59 = arith.constant 0 : index
    %56 = tpu.strided_load %arg15[%c1_58, %c0_59] {strides = array<i32: 3, 1>} : memref<35x64xf32, #tpu.memory_space<vmem>>, vector<11x64xf32>
    %c1_60 = arith.constant 1 : index
    %c0_61 = arith.constant 0 : index
    %c0_62 = arith.constant 0 : index
    %57 = vector.load %arg3[%c1_60, %c0_61, %c0_62] : memref<5x64x128xf32, #tpu.memory_space<vmem>>, vector<1x64x128xf32>
    %58 = vector.shape_cast %57 : vector<1x64x128xf32> to vector<64x128xf32>
    %cst_63 = arith.constant dense<0.000000e+00> : vector<11x128xf32>
    %59 = tpu.matmul %56, %58, %cst_63 {dimension_numbers = #tpu.dot_dimension_numbers<[1], [0], [0], [1], [0, 0, 1, 1], [], []>} : vector<11x64xf32>, vector<64x128xf32>, vector<11x128xf32> -> vector<11x128xf32>
    %60 = arith.addf %55, %59 : vector<11x128xf32>
    %c2_64 = arith.constant 2 : index
    %c0_65 = arith.constant 0 : index
    %61 = tpu.strided_load %arg15[%c2_64, %c0_65] {strides = array<i32: 3, 1>} : memref<35x64xf32, #tpu.memory_space<vmem>>, vector<11x64xf32>
    %c2_66 = arith.constant 2 : index
    %c0_67 = arith.constant 0 : index
    %c0_68 = arith.constant 0 : index
    %62 = vector.load %arg3[%c2_66, %c0_67, %c0_68] : memref<5x64x128xf32, #tpu.memory_space<vmem>>, vector<1x64x128xf32>
    %63 = vector.shape_cast %62 : vector<1x64x128xf32> to vector<64x128xf32>
    %cst_69 = arith.constant dense<0.000000e+00> : vector<11x128xf32>
    %64 = tpu.matmul %61, %63, %cst_69 {dimension_numbers = #tpu.dot_dimension_numbers<[1], [0], [0], [1], [0, 0, 1, 1], [], []>} : vector<11x64xf32>, vector<64x128xf32>, vector<11x128xf32> -> vector<11x128xf32>
    %65 = arith.addf %60, %64 : vector<11x128xf32>
    %c3_70 = arith.constant 3 : index
    %c0_71 = arith.constant 0 : index
    %66 = tpu.strided_load %arg15[%c3_70, %c0_71] {strides = array<i32: 3, 1>} : memref<35x64xf32, #tpu.memory_space<vmem>>, vector<11x64xf32>
    %c3_72 = arith.constant 3 : index
    %c0_73 = arith.constant 0 : index
    %c0_74 = arith.constant 0 : index
    %67 = vector.load %arg3[%c3_72, %c0_73, %c0_74] : memref<5x64x128xf32, #tpu.memory_space<vmem>>, vector<1x64x128xf32>
    %68 = vector.shape_cast %67 : vector<1x64x128xf32> to vector<64x128xf32>
    %cst_75 = arith.constant dense<0.000000e+00> : vector<11x128xf32>
    %69 = tpu.matmul %66, %68, %cst_75 {dimension_numbers = #tpu.dot_dimension_numbers<[1], [0], [0], [1], [0, 0, 1, 1], [], []>} : vector<11x64xf32>, vector<64x128xf32>, vector<11x128xf32> -> vector<11x128xf32>
    %70 = arith.addf %65, %69 : vector<11x128xf32>
    %c4_76 = arith.constant 4 : index
    %c0_77 = arith.constant 0 : index
    %71 = tpu.strided_load %arg15[%c4_76, %c0_77] {strides = array<i32: 3, 1>} : memref<35x64xf32, #tpu.memory_space<vmem>>, vector<11x64xf32>
    %c4_78 = arith.constant 4 : index
    %c0_79 = arith.constant 0 : index
    %c0_80 = arith.constant 0 : index
    %72 = vector.load %arg3[%c4_78, %c0_79, %c0_80] : memref<5x64x128xf32, #tpu.memory_space<vmem>>, vector<1x64x128xf32>
    %73 = vector.shape_cast %72 : vector<1x64x128xf32> to vector<64x128xf32>
    %cst_81 = arith.constant dense<0.000000e+00> : vector<11x128xf32>
    %74 = tpu.matmul %71, %73, %cst_81 {dimension_numbers = #tpu.dot_dimension_numbers<[1], [0], [0], [1], [0, 0, 1, 1], [], []>} : vector<11x64xf32>, vector<64x128xf32>, vector<11x128xf32> -> vector<11x128xf32>
    %75 = arith.addf %70, %74 : vector<11x128xf32>
    %76 = vector.broadcast %49 : vector<1x128xf32> to vector<11x128xf32>
    %77 = arith.addf %75, %76 : vector<11x128xf32>
    %cst_82 = arith.constant 0.000000e+00 : f32
    %78 = vector.broadcast %cst_82 : f32 to vector<11x128xf32>
    %79 = arith.cmpf ogt, %77, %78 : vector<11x128xf32>
    %cst_83 = arith.constant 1.000000e-01 : f32
    %80 = vector.broadcast %cst_83 : f32 to vector<11x128xf32>
    %81 = arith.mulf %80, %77 : vector<11x128xf32>
    %82 = arith.select %79, %77, %81 : vector<11x128xi1>, vector<11x128xf32>
    %c0_84 = arith.constant 0 : index
    %c0_85 = arith.constant 0 : index
    %c0_86 = arith.constant 0 : index
    %83 = vector.load %arg11[%c0_84, %c0_85, %c0_86] : memref<1x11x128xf32, #tpu.memory_space<vmem>>, vector<1x11x128xf32>
    %84 = vector.shape_cast %83 : vector<1x11x128xf32> to vector<11x128xf32>
    %85 = vector.shape_cast %82 : vector<11x128xf32> to vector<1x11x128xf32>
    tpu.vector_store %arg11[%c0_84, %c0_85, %c0_86], %85 {strides = array<i32>} : memref<1x11x128xf32, #tpu.memory_space<vmem>>, vector<1x11x128xf32>,
    %cst_87 = arith.constant 0.000000e+00 : f32
    %86 = vector.broadcast %cst_87 : f32 to vector<2x128xf32>
    %c0_88 = arith.constant 0 : index
    %c0_89 = arith.constant 0 : index
    %87 = vector.load %arg16[%c0_88, %c0_89] : memref<15x128xf32, #tpu.memory_space<vmem>>, vector<2x128xf32>
    tpu.vector_store %arg16[%c0_88, %c0_89], %86 {strides = array<i32>} : memref<15x128xf32, #tpu.memory_space<vmem>>, vector<2x128xf32>,
    %cst_90 = arith.constant 0.000000e+00 : f32
    %88 = vector.broadcast %cst_90 : f32 to vector<2x128xf32>
    %c13 = arith.constant 13 : index
    %c0_91 = arith.constant 0 : index
    %89 = vector.load %arg16[%c13, %c0_91] : memref<15x128xf32, #tpu.memory_space<vmem>>, vector<2x128xf32>
    tpu.vector_store %arg16[%c13, %c0_91], %88 {strides = array<i32>} : memref<15x128xf32, #tpu.memory_space<vmem>>, vector<2x128xf32>,
    %c2_92 = arith.constant 2 : index
    %c0_93 = arith.constant 0 : index
    %90 = vector.load %arg16[%c2_92, %c0_93] : memref<15x128xf32, #tpu.memory_space<vmem>>, vector<11x128xf32>
    tpu.vector_store %arg16[%c2_92, %c0_93], %82 {strides = array<i32>} : memref<15x128xf32, #tpu.memory_space<vmem>>, vector<11x128xf32>,
    %c0_94 = arith.constant 0 : index
    %c0_95 = arith.constant 0 : index
    %91 = vector.load %arg8[%c0_94, %c0_95] : memref<1x128xf32, #tpu.memory_space<vmem>>, vector<1x128xf32>
    %cst_96 = arith.constant 0.000000e+00 : f32
    %92 = vector.broadcast %cst_96 : f32 to vector<11x128xf32>
    %c0_97 = arith.constant 0 : index
    %c0_98 = arith.constant 0 : index
    %93 = vector.load %arg16[%c0_97, %c0_98] : memref<15x128xf32, #tpu.memory_space<vmem>>, vector<11x128xf32>
    %c0_99 = arith.constant 0 : index
    %c0_100 = arith.constant 0 : index
    %c0_101 = arith.constant 0 : index
    %94 = vector.load %arg4[%c0_99, %c0_100, %c0_101] : memref<5x128x128xf32, #tpu.memory_space<vmem>>, vector<1x128x128xf32>
    %95 = vector.shape_cast %94 : vector<1x128x128xf32> to vector<128x128xf32>
    %cst_102 = arith.constant dense<0.000000e+00> : vector<11x128xf32>
    %96 = tpu.matmul %93, %95, %cst_102 {dimension_numbers = #tpu.dot_dimension_numbers<[1], [0], [0], [1], [0, 0, 1, 1], [], []>} : vector<11x128xf32>, vector<128x128xf32>, vector<11x128xf32> -> vector<11x128xf32>
    %97 = arith.addf %92, %96 : vector<11x128xf32>
    %c1_103 = arith.constant 1 : index
    %c0_104 = arith.constant 0 : index
    %98 = vector.load %arg16[%c1_103, %c0_104] : memref<15x128xf32, #tpu.memory_space<vmem>>, vector<11x128xf32>
    %c1_105 = arith.constant 1 : index
    %c0_106 = arith.constant 0 : index
    %c0_107 = arith.constant 0 : index
    %99 = vector.load %arg4[%c1_105, %c0_106, %c0_107] : memref<5x128x128xf32, #tpu.memory_space<vmem>>, vector<1x128x128xf32>
    %100 = vector.shape_cast %99 : vector<1x128x128xf32> to vector<128x128xf32>
    %cst_108 = arith.constant dense<0.000000e+00> : vector<11x128xf32>
    %101 = tpu.matmul %98, %100, %cst_108 {dimension_numbers = #tpu.dot_dimension_numbers<[1], [0], [0], [1], [0, 0, 1, 1], [], []>} : vector<11x128xf32>, vector<128x128xf32>, vector<11x128xf32> -> vector<11x128xf32>
    %102 = arith.addf %97, %101 : vector<11x128xf32>
    %c2_109 = arith.constant 2 : index
    %c0_110 = arith.constant 0 : index
    %103 = vector.load %arg16[%c2_109, %c0_110] : memref<15x128xf32, #tpu.memory_space<vmem>>, vector<11x128xf32>
    %c2_111 = arith.constant 2 : index
    %c0_112 = arith.constant 0 : index
    %c0_113 = arith.constant 0 : index
    %104 = vector.load %arg4[%c2_111, %c0_112, %c0_113] : memref<5x128x128xf32, #tpu.memory_space<vmem>>, vector<1x128x128xf32>
    %105 = vector.shape_cast %104 : vector<1x128x128xf32> to vector<128x128xf32>
    %cst_114 = arith.constant dense<0.000000e+00> : vector<11x128xf32>
    %106 = tpu.matmul %103, %105, %cst_114 {dimension_numbers = #tpu.dot_dimension_numbers<[1], [0], [0], [1], [0, 0, 1, 1], [], []>} : vector<11x128xf32>, vector<128x128xf32>, vector<11x128xf32> -> vector<11x128xf32>
    %107 = arith.addf %102, %106 : vector<11x128xf32>
    %c3_115 = arith.constant 3 : index
    %c0_116 = arith.constant 0 : index
    %108 = vector.load %arg16[%c3_115, %c0_116] : memref<15x128xf32, #tpu.memory_space<vmem>>, vector<11x128xf32>
    %c3_117 = arith.constant 3 : index
    %c0_118 = arith.constant 0 : index
    %c0_119 = arith.constant 0 : index
    %109 = vector.load %arg4[%c3_117, %c0_118, %c0_119] : memref<5x128x128xf32, #tpu.memory_space<vmem>>, vector<1x128x128xf32>
    %110 = vector.shape_cast %109 : vector<1x128x128xf32> to vector<128x128xf32>
    %cst_120 = arith.constant dense<0.000000e+00> : vector<11x128xf32>
    %111 = tpu.matmul %108, %110, %cst_120 {dimension_numbers = #tpu.dot_dimension_numbers<[1], [0], [0], [1], [0, 0, 1, 1], [], []>} : vector<11x128xf32>, vector<128x128xf32>, vector<11x128xf32> -> vector<11x128xf32>
    %112 = arith.addf %107, %111 : vector<11x128xf32>
    %c4_121 = arith.constant 4 : index
    %c0_122 = arith.constant 0 : index
    %113 = vector.load %arg16[%c4_121, %c0_122] : memref<15x128xf32, #tpu.memory_space<vmem>>, vector<11x128xf32>
    %c4_123 = arith.constant 4 : index
    %c0_124 = arith.constant 0 : index
    %c0_125 = arith.constant 0 : index
    %114 = vector.load %arg4[%c4_123, %c0_124, %c0_125] : memref<5x128x128xf32, #tpu.memory_space<vmem>>, vector<1x128x128xf32>
    %115 = vector.shape_cast %114 : vector<1x128x128xf32> to vector<128x128xf32>
    %cst_126 = arith.constant dense<0.000000e+00> : vector<11x128xf32>
    %116 = tpu.matmul %113, %115, %cst_126 {dimension_numbers = #tpu.dot_dimension_numbers<[1], [0], [0], [1], [0, 0, 1, 1], [], []>} : vector<11x128xf32>, vector<128x128xf32>, vector<11x128xf32> -> vector<11x128xf32>
    %117 = arith.addf %112, %116 : vector<11x128xf32>
    %118 = vector.broadcast %91 : vector<1x128xf32> to vector<11x128xf32>
    %119 = arith.addf %117, %118 : vector<11x128xf32>
    %cst_127 = arith.constant 0.000000e+00 : f32
    %120 = vector.broadcast %cst_127 : f32 to vector<11x128xf32>
    %121 = arith.cmpf ogt, %119, %120 : vector<11x128xf32>
    %cst_128 = arith.constant 1.000000e-01 : f32
    %122 = vector.broadcast %cst_128 : f32 to vector<11x128xf32>
    %123 = arith.mulf %122, %119 : vector<11x128xf32>
    %124 = arith.select %121, %119, %123 : vector<11x128xi1>, vector<11x128xf32>
    %c0_129 = arith.constant 0 : index
    %c0_130 = arith.constant 0 : index
    %c0_131 = arith.constant 0 : index
    %125 = vector.load %arg12[%c0_129, %c0_130, %c0_131] : memref<1x11x128xf32, #tpu.memory_space<vmem>>, vector<1x11x128xf32>
    %126 = vector.shape_cast %125 : vector<1x11x128xf32> to vector<11x128xf32>
    %127 = vector.shape_cast %124 : vector<11x128xf32> to vector<1x11x128xf32>
    tpu.vector_store %arg12[%c0_129, %c0_130, %c0_131], %127 {strides = array<i32>} : memref<1x11x128xf32, #tpu.memory_space<vmem>>, vector<1x11x128xf32>,
    %cst_132 = arith.constant 0.000000e+00 : f32
    %128 = vector.broadcast %cst_132 : f32 to vector<1x128xf32>
    %c0_133 = arith.constant 0 : index
    %c0_134 = arith.constant 0 : index
    %129 = vector.load %arg17[%c0_133, %c0_134] : memref<13x128xf32, #tpu.memory_space<vmem>>, vector<1x128xf32>
    tpu.vector_store %arg17[%c0_133, %c0_134], %128 {strides = array<i32>} : memref<13x128xf32, #tpu.memory_space<vmem>>, vector<1x128xf32>,
    %cst_135 = arith.constant 0.000000e+00 : f32
    %130 = vector.broadcast %cst_135 : f32 to vector<1x128xf32>
    %c12 = arith.constant 12 : index
    %c0_136 = arith.constant 0 : index
    %131 = vector.load %arg17[%c12, %c0_136] : memref<13x128xf32, #tpu.memory_space<vmem>>, vector<1x128xf32>
    tpu.vector_store %arg17[%c12, %c0_136], %130 {strides = array<i32>} : memref<13x128xf32, #tpu.memory_space<vmem>>, vector<1x128xf32>,
    %c1_137 = arith.constant 1 : index
    %c0_138 = arith.constant 0 : index
    %132 = vector.load %arg17[%c1_137, %c0_138] : memref<13x128xf32, #tpu.memory_space<vmem>>, vector<11x128xf32>
    tpu.vector_store %arg17[%c1_137, %c0_138], %124 {strides = array<i32>} : memref<13x128xf32, #tpu.memory_space<vmem>>, vector<11x128xf32>,
    %c0_139 = arith.constant 0 : index
    %c0_140 = arith.constant 0 : index
    %133 = vector.load %arg9[%c0_139, %c0_140] : memref<1x8xf32, #tpu.memory_space<vmem>>, vector<1x8xf32>
    %cst_141 = arith.constant 0.000000e+00 : f32
    %134 = vector.broadcast %cst_141 : f32 to vector<11x8xf32>
    %c0_142 = arith.constant 0 : index
    %c0_143 = arith.constant 0 : index
    %135 = vector.load %arg17[%c0_142, %c0_143] : memref<13x128xf32, #tpu.memory_space<vmem>>, vector<11x128xf32>
    %c0_144 = arith.constant 0 : index
    %c0_145 = arith.constant 0 : index
    %c0_146 = arith.constant 0 : index
    %136 = vector.load %arg5[%c0_144, %c0_145, %c0_146] : memref<3x128x8xf32, #tpu.memory_space<vmem>>, vector<1x128x8xf32>
    %137 = vector.shape_cast %136 : vector<1x128x8xf32> to vector<128x8xf32>
    %cst_147 = arith.constant dense<0.000000e+00> : vector<11x8xf32>
    %138 = tpu.matmul %135, %137, %cst_147 {dimension_numbers = #tpu.dot_dimension_numbers<[1], [0], [0], [1], [0, 0, 1, 1], [], []>} : vector<11x128xf32>, vector<128x8xf32>, vector<11x8xf32> -> vector<11x8xf32>
    %139 = arith.addf %134, %138 : vector<11x8xf32>
    %c1_148 = arith.constant 1 : index
    %c0_149 = arith.constant 0 : index
    %140 = vector.load %arg17[%c1_148, %c0_149] : memref<13x128xf32, #tpu.memory_space<vmem>>, vector<11x128xf32>
    %c1_150 = arith.constant 1 : index
    %c0_151 = arith.constant 0 : index
    %c0_152 = arith.constant 0 : index
    %141 = vector.load %arg5[%c1_150, %c0_151, %c0_152] : memref<3x128x8xf32, #tpu.memory_space<vmem>>, vector<1x128x8xf32>
    %142 = vector.shape_cast %141 : vector<1x128x8xf32> to vector<128x8xf32>
    %cst_153 = arith.constant dense<0.000000e+00> : vector<11x8xf32>
    %143 = tpu.matmul %140, %142, %cst_153 {dimension_numbers = #tpu.dot_dimension_numbers<[1], [0], [0], [1], [0, 0, 1, 1], [], []>} : vector<11x128xf32>, vector<128x8xf32>, vector<11x8xf32> -> vector<11x8xf32>
    %144 = arith.addf %139, %143 : vector<11x8xf32>
    %c2_154 = arith.constant 2 : index
    %c0_155 = arith.constant 0 : index
    %145 = vector.load %arg17[%c2_154, %c0_155] : memref<13x128xf32, #tpu.memory_space<vmem>>, vector<11x128xf32>
    %c2_156 = arith.constant 2 : index
    %c0_157 = arith.constant 0 : index
    %c0_158 = arith.constant 0 : index
    %146 = vector.load %arg5[%c2_156, %c0_157, %c0_158] : memref<3x128x8xf32, #tpu.memory_space<vmem>>, vector<1x128x8xf32>
    %147 = vector.shape_cast %146 : vector<1x128x8xf32> to vector<128x8xf32>
    %cst_159 = arith.constant dense<0.000000e+00> : vector<11x8xf32>
    %148 = tpu.matmul %145, %147, %cst_159 {dimension_numbers = #tpu.dot_dimension_numbers<[1], [0], [0], [1], [0, 0, 1, 1], [], []>} : vector<11x128xf32>, vector<128x8xf32>, vector<11x8xf32> -> vector<11x8xf32>
    %149 = arith.addf %144, %148 : vector<11x8xf32>
    %150 = vector.broadcast %133 : vector<1x8xf32> to vector<11x8xf32>
    %151 = arith.addf %149, %150 : vector<11x8xf32>
    %c0_160 = arith.constant 0 : index
    %c0_161 = arith.constant 0 : index
    %c0_162 = arith.constant 0 : index
    %152 = vector.load %arg13[%c0_160, %c0_161, %c0_162] : memref<1x11x8xf32, #tpu.memory_space<vmem>>, vector<1x11x8xf32>
    %153 = vector.shape_cast %152 : vector<1x11x8xf32> to vector<11x8xf32>
    %154 = vector.shape_cast %151 : vector<11x8xf32> to vector<1x11x8xf32>
    tpu.vector_store %arg13[%c0_160, %c0_161, %c0_162], %154 {strides = array<i32>} : memref<1x11x8xf32, #tpu.memory_space<vmem>>, vector<1x11x8xf32>,
    return
  }
  func.func @transform_0(%arg0: i32) -> (i32, i32, i32) {
    %c0_i32 = arith.constant 0 : i32
    %c0_i32_0 = arith.constant 0 : i32
    %c0_i32_1 = arith.constant 0 : i32
    return %arg0, %c0_i32, %c0_i32_0 : i32, i32, i32
  }
  func.func @transform_1(%arg0: i32) -> (i32, i32, i32) {
    %c0_i32 = arith.constant 0 : i32
    %c0_i32_0 = arith.constant 0 : i32
    %c0_i32_1 = arith.constant 0 : i32
    %c0_i32_2 = arith.constant 0 : i32
    return %c0_i32, %c0_i32_0, %c0_i32_1 : i32, i32, i32
  }
  func.func @transform_2(%arg0: i32) -> (i32, i32, i32) {
    %c0_i32 = arith.constant 0 : i32
    %c0_i32_0 = arith.constant 0 : i32
    %c0_i32_1 = arith.constant 0 : i32
    %c0_i32_2 = arith.constant 0 : i32
    return %c0_i32, %c0_i32_0, %c0_i32_1 : i32, i32, i32
  }
  func.func @transform_3(%arg0: i32) -> (i32, i32, i32) {
    %c0_i32 = arith.constant 0 : i32
    %c0_i32_0 = arith.constant 0 : i32
    %c0_i32_1 = arith.constant 0 : i32
    %c0_i32_2 = arith.constant 0 : i32
    return %c0_i32, %c0_i32_0, %c0_i32_1 : i32, i32, i32
  }
  func.func @transform_4(%arg0: i32) -> (i32, i32, i32) {
    %c0_i32 = arith.constant 0 : i32
    %c0_i32_0 = arith.constant 0 : i32
    %c0_i32_1 = arith.constant 0 : i32
    %c0_i32_2 = arith.constant 0 : i32
    return %c0_i32, %c0_i32_0, %c0_i32_1 : i32, i32, i32
  }
  func.func @transform_5(%arg0: i32) -> (i32, i32) {
    %c0_i32 = arith.constant 0 : i32
    %c0_i32_0 = arith.constant 0 : i32
    %c0_i32_1 = arith.constant 0 : i32
    return %c0_i32, %c0_i32_0 : i32, i32
  }
  func.func @transform_6(%arg0: i32) -> (i32, i32) {
    %c0_i32 = arith.constant 0 : i32
    %c0_i32_0 = arith.constant 0 : i32
    %c0_i32_1 = arith.constant 0 : i32
    return %c0_i32, %c0_i32_0 : i32, i32
  }
  func.func @transform_7(%arg0: i32) -> (i32, i32) {
    %c0_i32 = arith.constant 0 : i32
    %c0_i32_0 = arith.constant 0 : i32
    %c0_i32_1 = arith.constant 0 : i32
    return %c0_i32, %c0_i32_0 : i32, i32
  }
  func.func @transform_8(%arg0: i32) -> (i32, i32) {
    %c0_i32 = arith.constant 0 : i32
    %c0_i32_0 = arith.constant 0 : i32
    %c0_i32_1 = arith.constant 0 : i32
    return %c0_i32, %c0_i32_0 : i32, i32
  }
  func.func @transform_9(%arg0: i32) -> (i32, i32, i32) {
    %c0_i32 = arith.constant 0 : i32
    %c0_i32_0 = arith.constant 0 : i32
    %c0_i32_1 = arith.constant 0 : i32
    return %arg0, %c0_i32, %c0_i32_0 : i32, i32, i32
  }
  func.func @transform_10(%arg0: i32) -> (i32, i32, i32) {
    %c0_i32 = arith.constant 0 : i32
    %c0_i32_0 = arith.constant 0 : i32
    %c0_i32_1 = arith.constant 0 : i32
    return %arg0, %c0_i32, %c0_i32_0 : i32, i32, i32
  }
  func.func @transform_11(%arg0: i32) -> (i32, i32, i32) {
    %c0_i32 = arith.constant 0 : i32
    %c0_i32_0 = arith.constant 0 : i32
    %c0_i32_1 = arith.constant 0 : i32
    return %arg0, %c0_i32, %c0_i32_0 : i32, i32, i32
  }
  func.func @transform_12(%arg0: i32) -> (i32, i32, i32) {
    %c0_i32 = arith.constant 0 : i32
    %c0_i32_0 = arith.constant 0 : i32
    %c0_i32_1 = arith.constant 0 : i32
    return %arg0, %c0_i32, %c0_i32_0 : i32, i32, i32
  }
}

</mosaic_0001>

<llo_original>
// kernel: tpu_custom_call.1
$region0: #{tpu_custom_call.1}
  #allocation0 [shape = 'u32[]', space=smem, size = 0x4, offset = 0x4, fixed_abs, tag = 'smem constant byte address 0x4 - core index']
  #allocation1 [shape = 'u32[144,128]{1,0:T(1,128)}', space=vmem, size = 0x12000, scoped, tag = 'internal scratch']
  #allocation2 [shape = 'f32[98,8]{1,0:T(8,128)}', space=vmem, size = 0xd000, scoped, tag = 'scratch operand']
  #allocation3 [shape = 'f32[35,64]{1,0:T(8,128)}', space=vmem, size = 0x5000, scoped, tag = 'scratch operand']
  #allocation4 [shape = 'f32[15,128]{1,0:T(8,128)}', space=vmem, size = 0x2000, scoped, tag = 'scratch operand']
  #allocation5 [shape = 'f32[13,128]{1,0:T(8,128)}', space=vmem, size = 0x2000, scoped, tag = 'scratch operand']
  %s0 = inlined_call_operand.vmem [shape: f32[1,95,8], index: 0, kind: input, shape index: {}]
  %s1 = inlined_call_operand.vmem [shape: f32[5,8,64], index: 1, kind: input, shape index: {}]
  %s2 = inlined_call_operand.vmem [shape: f32[5,64,128], index: 2, kind: input, shape index: {}]
  %s3 = inlined_call_operand.hbm [shape: f32[5,128,128], index: 3, kind: input, shape index: {}]
  %s4 = inlined_call_operand.vmem [shape: f32[3,128,8], index: 4, kind: input, shape index: {}]
  %s5 = inlined_call_operand.vmem [shape: f32[1,64], index: 5, kind: input, shape index: {}]
  %s6 = inlined_call_operand.vmem [shape: f32[1,128], index: 6, kind: input, shape index: {}]
  %s7 = inlined_call_operand.vmem [shape: f32[1,128], index: 7, kind: input, shape index: {}]
  %s8 = inlined_call_operand.vmem [shape: f32[1,8], index: 8, kind: input, shape index: {}]
  %s9 = inlined_call_operand.hbm [shape: f32[1,32,64], index: 9, kind: output, shape index: {0}]
  %s10 = inlined_call_operand.vmem [shape: f32[1,11,128], index: 10, kind: output, shape index: {1}]
  %s11 = inlined_call_operand.vmem [shape: f32[1,11,128], index: 11, kind: output, shape index: {2}]
  %s12 = inlined_call_operand.vmem [shape: f32[1,11,8], index: 12, kind: output, shape index: {3}]
  %13 = xla_tuple %s9, %s10, %s11, %s12
  %s14 = sld [smem:[#allocation0]]
  $region74: #{tpu_custom_call.1} parent=0
    _
  %s16 = ssub.s32 1, %s14
  %s17 = scalar_select 0, %s16, %s14
  $region1: #{tpu_custom_call.1} parent=0
    #allocation6 [shape = 'u8[327680]{0}', space=vmem, size = 0x50000, scoped, tag = 'input window, operand 3, single buffered']
    #allocation7 [shape = 's32[1]{0}', space=sflag, size = 0x4, scoped, tag = 'scoped memory for tpu_custom_call.1']
    #allocation8 [shape = 's32[1]{0}', space=sflag, size = 0x4, scoped, tag = 'scoped memory for tpu_custom_call.1']
    #allocation9 [shape = 'u8[16384]{0}', space=vmem, size = 0x4000, scoped, tag = 'output window, operand 0, single buffered']
    %18 = vsyncpa [#allocation7], 0
    %19 = vsyncpa [#allocation8], 0
    // Predicated region
    $region2: #{tpu_custom_call.1} parent=1 // pred_check
      _
    $region3: #{tpu_custom_call.1} parent=1 // pred_check_branch
      %21 = sbr.rel (0) target = $region5
    $region4: #{tpu_custom_call.1} parent=1 // pred_region
      _
    $region5: #{tpu_custom_call.1} parent=1 // pred_fallthru
      _
    // Predicated region
    $region6: #{tpu_custom_call.1} parent=1 // pred_check
      _
    $region7: #{tpu_custom_call.1} parent=1 // pred_check_branch
      %23 = sbr.rel (0) target = $region9
    $region8: #{tpu_custom_call.1} parent=1 // pred_region
      _
    $region9: #{tpu_custom_call.1} parent=1 // pred_fallthru
      _
    // Predicated region
    $region10: #{tpu_custom_call.1} parent=1 // pred_check
      _
    $region11: #{tpu_custom_call.1} parent=1 // pred_check_branch
      %25 = sbr.rel (0) target = $region13
    $region12: #{tpu_custom_call.1} parent=1 // pred_region
      _
    $region13: #{tpu_custom_call.1} parent=1 // pred_fallthru
      _
    // Predicated region
    $region14: #{tpu_custom_call.1} parent=1 // pred_check
      _
    $region15: #{tpu_custom_call.1} parent=1 // pred_check_branch
      %27 = sbr.rel (0) target = $region17
    $region16: #{tpu_custom_call.1} parent=1 // pred_region
      %s29 = ssub.s32 10240, 10240
      %30 = vsyncadd [#allocation7], %s29
      %s31 = sshll.u32 [#allocation6], 4
      %s32 = int_to_ptr.vmem [resolvable:$true] %s31
      %37 = dma.hbm_to_vmem [thread:$0]  %s3, 10240, %s32, [#allocation7], 128, 128, 8
    $region17: #{tpu_custom_call.1} parent=1 // pred_fallthru
      _
    // Predicated region
    $region18: #{tpu_custom_call.1} parent=1 // pred_check
      _
    $region19: #{tpu_custom_call.1} parent=1 // pred_check_branch
      %39 = sbr.rel (0) target = $region21
    $region20: #{tpu_custom_call.1} parent=1 // pred_region
      _
    $region21: #{tpu_custom_call.1} parent=1 // pred_fallthru
      _
    // Predicated region
    $region22: #{tpu_custom_call.1} parent=1 // pred_check
      _
    $region23: #{tpu_custom_call.1} parent=1 // pred_check_branch
      %41 = sbr.rel (0) target = $region25
    $region24: #{tpu_custom_call.1} parent=1 // pred_region
      _
    $region25: #{tpu_custom_call.1} parent=1 // pred_fallthru
      _
    // Predicated region
    $region26: #{tpu_custom_call.1} parent=1 // pred_check
      _
    $region27: #{tpu_custom_call.1} parent=1 // pred_check_branch
      %43 = sbr.rel (0) target = $region29
    $region28: #{tpu_custom_call.1} parent=1 // pred_region
      _
    $region29: #{tpu_custom_call.1} parent=1 // pred_fallthru
      _
    // Predicated region
    $region30: #{tpu_custom_call.1} parent=1 // pred_check
      _
    $region31: #{tpu_custom_call.1} parent=1 // pred_check_branch
      %45 = sbr.rel (0) target = $region33
    $region32: #{tpu_custom_call.1} parent=1 // pred_region
      _
    $region33: #{tpu_custom_call.1} parent=1 // pred_fallthru
      _
    // Predicated region
    $region34: #{tpu_custom_call.1} parent=1 // pred_check
      _
    $region35: #{tpu_custom_call.1} parent=1 // pred_check_branch
      %47 = sbr.rel (0) target = $region37
    $region36: #{tpu_custom_call.1} parent=1 // pred_region
      _
    $region37: #{tpu_custom_call.1} parent=1 // pred_fallthru
      _
    // Predicated region
    $region38: #{tpu_custom_call.1} parent=1 // pred_check
      _
    $region39: #{tpu_custom_call.1} parent=1 // pred_check_branch
      %49 = sbr.rel (0) target = $region41
    $region40: #{tpu_custom_call.1} parent=1 // pred_region
      %50 = dma.done [#allocation7], 10240
    $region41: #{tpu_custom_call.1} parent=1 // pred_fallthru
      _
    %v51 = vld [vmem:[%s0] sm:$0xff]
    %v52 = vld [vmem:[%s0 + $0x8] sm:$0xff]
    %v53 = vld [vmem:[%s0 + $0x10] sm:$0xff]
    %v54 = vld [vmem:[%s0 + $0x18] sm:$0xff]
    %v55 = vld [vmem:[%s0 + $0x20] sm:$0xff]
    %v56 = vld [vmem:[%s0 + $0x28] sm:$0xff]
    %v57 = vld [vmem:[%s0 + $0x30] sm:$0xff]
    %v58 = vld [vmem:[%s0 + $0x38] sm:$0xff]
    %v59 = vld [vmem:[%s0 + $0x40] sm:$0xff]
    %v60 = vld [vmem:[%s0 + $0x48] sm:$0xff]
    %v61 = vld [vmem:[%s0 + $0x50] sm:$0xff]
    %v62 = vld [vmem:[%s0 + $0x58] sm:$0x7f]
    %vm63 = vcmask 58368
    %64 = vst.msk [vmem:[#allocation2] sm:$0x3] %vm63, 0.0
    %vm65 = vcmask 57344
    %66 = vst.msk [vmem:[#allocation2 + $0x61] sm:$0x1] %vm65, 0.0
    %vm67 = vcmask 64512
    %68 = vst.msk [vmem:[#allocation2 + $0x2] sm:$0xff] %vm67, %v51
    %69 = vst.msk [vmem:[#allocation2 + $0xa] sm:$0xff] %vm67, %v52
    %70 = vst.msk [vmem:[#allocation2 + $0x12] sm:$0xff] %vm67, %v53
    %71 = vst.msk [vmem:[#allocation2 + $0x1a] sm:$0xff] %vm67, %v54
    %72 = vst.msk [vmem:[#allocation2 + $0x22] sm:$0xff] %vm67, %v55
    %73 = vst.msk [vmem:[#allocation2 + $0x2a] sm:$0xff] %vm67, %v56
    %74 = vst.msk [vmem:[#allocation2 + $0x32] sm:$0xff] %vm67, %v57
    %75 = vst.msk [vmem:[#allocation2 + $0x3a] sm:$0xff] %vm67, %v58
    %76 = vst.msk [vmem:[#allocation2 + $0x42] sm:$0xff] %vm67, %v59
    %77 = vst.msk [vmem:[#allocation2 + $0x4a] sm:$0xff] %vm67, %v60
    %78 = vst.msk [vmem:[#allocation2 + $0x52] sm:$0xff] %vm67, %v61
    %vm79 = vcmask 63488
    %80 = vst.msk [vmem:[#allocation2 + $0x5a] sm:$0x7f] %vm79, %v62
    %v81 = vld [vmem:[%s5] sm:$0x1]
    %v82 = vld [vmem:[#allocation2] ss:$3 sm:$0xff]
    %s83 = scalar_lea.vmem [#allocation2], 24
    %v84 = vld [vmem:[%s83] ss:$3 sm:$0xff]
    %s85 = scalar_lea.vmem [#allocation2], 48
    %v86 = vld [vmem:[%s85] ss:$3 sm:$0xff]
    %s87 = scalar_lea.vmem [#allocation2], 72
    %v88 = vld [vmem:[%s87] ss:$3 sm:$0xff]
    %v89 = vld [vmem:[%s1] sm:$0xff]
    %s90 = scalar_lea.vmem [#allocation2], 1
    %v91 = vld [vmem:[%s90] ss:$3 sm:$0xff]
    %s92 = scalar_lea.vmem [#allocation2], 25
    %v93 = vld [vmem:[%s92] ss:$3 sm:$0xff]
    %s94 = scalar_lea.vmem [#allocation2], 49
    %v95 = vld [vmem:[%s94] ss:$3 sm:$0xff]
    %s96 = scalar_lea.vmem [#allocation2], 73
    %v97 = vld [vmem:[%s96] ss:$3 sm:$0xff]
    %s98 = scalar_lea.vmem %s1, 8
    %v99 = vld [vmem:[%s98] sm:$0xff]
    %v101 = vsel %vm67, %v91, 0
    %v104 = vsel %vm67, %v93, 0
    %v107 = vsel %vm67, %v95, 0
    %v110 = vsel %vm67, %v97, 0
    %112 = vmatprep.subr.mxu0 0.0
    %113 = vmatpush1.msra.mxu0 %v99
    %114 = vmatprep.subr.mxu0 0.0
    %115 = vmatpush1.msra.mxu0 0.0
    %116 = vmatprep.subr.mxu0 0.0
    %117 = vmatpush1.msra.mxu0 0.0
    %118 = vmatprep.subr.mxu0 0.0
    %119 = vmatpush1.msra.mxu0 0.0
    %120 = vmatprep.subr.mxu0 0.0
    %121 = vmatpush1.msra.mxu0 0.0
    %122 = vmatprep.subr.mxu0 0.0
    %123 = vmatpush1.msra.mxu0 0.0
    %124 = vmatprep.subr.mxu0 0.0
    %125 = vmatpush1.msra.mxu0 0.0
    %126 = vmatprep.subr.mxu0 0.0
    %127 = vmatpush1.msra.mxu0 0.0
    %128 = vmatprep.subr.mxu0 0.0
    %129 = vmatpush1.msra.mxu0 0.0
    %130 = vmatprep.subr.mxu0 0.0
    %131 = vmatpush1.msra.mxu0 0.0
    %132 = vmatprep.subr.mxu0 0.0
    %133 = vmatpush1.msra.mxu0 0.0
    %134 = vmatprep.subr.mxu0 0.0
    %135 = vmatpush1.msra.mxu0 0.0
    %136 = vmatprep.subr.mxu0 0.0
    %137 = vmatpush1.msra.mxu0 0.0
    %138 = vmatprep.subr.mxu0 0.0
    %139 = vmatpush1.msra.mxu0 0.0
    %140 = vmatprep.subr.mxu0 0.0
    %141 = vmatpush1.msra.mxu0 0.0
    %142 = vmatprep.subr.mxu0 0.0
    %143 = vmatpush1.msra.mxu0 0.0
    %144 = vmatprep.subr.mxu0 0.0
    %145 = vmatpush1.msra.mxu0 0.0
    %146 = vmatprep.subr.mxu0 0.0
    %147 = vmatpush1.msra.mxu0 0.0
    %148 = vmatprep.subr.mxu0 0.0
    %149 = vmatpush1.msra.mxu0 0.0
    %150 = vmatprep.subr.mxu0 0.0
    %151 = vmatpush1.msra.mxu0 0.0
    %152 = vmatprep.subr.mxu0 0.0
    %153 = vmatpush1.msra.mxu0 0.0
    %154 = vmatprep.subr.mxu0 0.0
    %155 = vmatpush1.msra.mxu0 0.0
    %156 = vmatprep.subr.mxu0 0.0
    %157 = vmatpush1.msra.mxu0 0.0
    %158 = vmatprep.subr.mxu0 0.0
    %159 = vmatpush1.msra.mxu0 0.0
    %160 = vmatprep.subr.mxu0 0.0
    %161 = vmatpush1.msra.mxu0 0.0
    %162 = vmatprep.subr.mxu0 0.0
    %163 = vmatpush1.msra.mxu0 0.0
    %164 = vmatprep.subr.mxu0 0.0
    %165 = vmatpush1.msra.mxu0 0.0
    %166 = vmatprep.subr.mxu0 0.0
    %167 = vmatpush1.msra.mxu0 0.0
    %168 = vmatprep.subr.mxu0 0.0
    %169 = vmatpush1.msra.mxu0 0.0
    %170 = vmatprep.subr.mxu0 0.0
    %171 = vmatpush1.msra.mxu0 0.0
    %172 = vmatprep.subr.mxu0 0.0
    %173 = vmatpush1.msra.mxu0 0.0
    %174 = vmatprep.subr.mxu0 0.0
    %175 = vmatpush1.msra.mxu0 0.0
    %176 = vmatprep.mubr.f32.mxu0 0.0
    %177 = vmatmul.mubr.f32.gmra.mrb[0].mxu0 %v101
    %v178 = vpop.f32.mrb[0].mxu0
    %v179 = vadd.f32 0.0, %v178
    %v180 = vpop.f32.mrb[0].mxu0
    %181 = vmatprep.mubr.f32.mxu0 0.0
    %182 = vmatmul.mubr.f32.gmra.mrb[0].mxu0 %v104
    %v183 = vpop.f32.mrb[0].mxu0
    %v184 = vadd.f32 0.0, %v183
    %v185 = vpop.f32.mrb[0].mxu0
    %186 = vmatprep.mubr.f32.mxu0 0.0
    %187 = vmatmul.mubr.f32.gmra.mrb[0].mxu0 %v107
    %v188 = vpop.f32.mrb[0].mxu0
    %v189 = vadd.f32 0.0, %v188
    %v190 = vpop.f32.mrb[0].mxu0
    %191 = vmatprep.mubr.f32.mxu0 0.0
    %192 = vmatmul.mubr.f32.gmra.mrb[0].mxu0 %v110
    %v193 = vpop.f32.mrb[0].mxu0
    %v194 = vadd.f32 0.0, %v193
    %v195 = vpop.f32.mrb[0].mxu0
    %196 = vdwg.mxu0
    %v198 = vsel %vm67, %v82, 0
    %v201 = vsel %vm67, %v84, 0
    %v204 = vsel %vm67, %v86, 0
    %v207 = vsel %vm67, %v88, 0
    %209 = vmatprep.subr.mxu0 0.0
    %210 = vmatpush1.msra.mxu0 %v89
    %211 = vmatprep.subr.mxu0 0.0
    %212 = vmatpush1.msra.mxu0 0.0
    %213 = vmatprep.subr.mxu0 0.0
    %214 = vmatpush1.msra.mxu0 0.0
    %215 = vmatprep.subr.mxu0 0.0
    %216 = vmatpush1.msra.mxu0 0.0
    %217 = vmatprep.subr.mxu0 0.0
    %218 = vmatpush1.msra.mxu0 0.0
    %219 = vmatprep.subr.mxu0 0.0
    %220 = vmatpush1.msra.mxu0 0.0
    %221 = vmatprep.subr.mxu0 0.0
    %222 = vmatpush1.msra.mxu0 0.0
    %223 = vmatprep.subr.mxu0 0.0
    %224 = vmatpush1.msra.mxu0 0.0
    %225 = vmatprep.subr.mxu0 0.0
    %226 = vmatpush1.msra.mxu0 0.0
    %227 = vmatprep.subr.mxu0 0.0
    %228 = vmatpush1.msra.mxu0 0.0
    %229 = vmatprep.subr.mxu0 0.0
    %230 = vmatpush1.msra.mxu0 0.0
    %231 = vmatprep.subr.mxu0 0.0
    %232 = vmatpush1.msra.mxu0 0.0
    %233 = vmatprep.subr.mxu0 0.0
    %234 = vmatpush1.msra.mxu0 0.0
    %235 = vmatprep.subr.mxu0 0.0
    %236 = vmatpush1.msra.mxu0 0.0
    %237 = vmatprep.subr.mxu0 0.0
    %238 = vmatpush1.msra.mxu0 0.0
    %239 = vmatprep.subr.mxu0 0.0
    %240 = vmatpush1.msra.mxu0 0.0
    %241 = vmatprep.subr.mxu0 0.0
    %242 = vmatpush1.msra.mxu0 0.0
    %243 = vmatprep.subr.mxu0 0.0
    %244 = vmatpush1.msra.mxu0 0.0
    %245 = vmatprep.subr.mxu0 0.0
    %246 = vmatpush1.msra.mxu0 0.0
    %247 = vmatprep.subr.mxu0 0.0
    %248 = vmatpush1.msra.mxu0 0.0
    %249 = vmatprep.subr.mxu0 0.0
    %250 = vmatpush1.msra.mxu0 0.0
    %251 = vmatprep.subr.mxu0 0.0
    %252 = vmatpush1.msra.mxu0 0.0
    %253 = vmatprep.subr.mxu0 0.0
    %254 = vmatpush1.msra.mxu0 0.0
    %255 = vmatprep.subr.mxu0 0.0
    %256 = vmatpush1.msra.mxu0 0.0
    %257 = vmatprep.subr.mxu0 0.0
    %258 = vmatpush1.msra.mxu0 0.0
    %259 = vmatprep.subr.mxu0 0.0
    %260 = vmatpush1.msra.mxu0 0.0
    %261 = vmatprep.subr.mxu0 0.0
    %262 = vmatpush1.msra.mxu0 0.0
    %263 = vmatprep.subr.mxu0 0.0
    %264 = vmatpush1.msra.mxu0 0.0
    %265 = vmatprep.subr.mxu0 0.0
    %266 = vmatpush1.msra.mxu0 0.0
    %267 = vmatprep.subr.mxu0 0.0
    %268 = vmatpush1.msra.mxu0 0.0
    %269 = vmatprep.subr.mxu0 0.0
    %270 = vmatpush1.msra.mxu0 0.0
    %271 = vmatprep.subr.mxu0 0.0
    %272 = vmatpush1.msra.mxu0 0.0
    %273 = vmatprep.mubr.f32.mxu0 0.0
    %274 = vmatmul.mubr.f32.gmra.mrb[0].mxu0 %v198
    %v275 = vpop.f32.mrb[0].mxu0
    %v276 = vadd.f32 %v179, %v275
    %v277 = vpop.f32.mrb[0].mxu0
    %278 = vmatprep.mubr.f32.mxu0 0.0
    %279 = vmatmul.mubr.f32.gmra.mrb[0].mxu0 %v201
    %v280 = vpop.f32.mrb[0].mxu0
    %v281 = vadd.f32 %v184, %v280
    %v282 = vpop.f32.mrb[0].mxu0
    %283 = vmatprep.mubr.f32.mxu0 0.0
    %284 = vmatmul.mubr.f32.gmra.mrb[0].mxu0 %v204
    %v285 = vpop.f32.mrb[0].mxu0
    %v286 = vadd.f32 %v189, %v285
    %v287 = vpop.f32.mrb[0].mxu0
    %288 = vmatprep.mubr.f32.mxu0 0.0
    %289 = vmatmul.mubr.f32.gmra.mrb[0].mxu0 %v207
    %v290 = vpop.f32.mrb[0].mxu0
    %v291 = vadd.f32 %v194, %v290
    %v292 = vpop.f32.mrb[0].mxu0
    %293 = vdwg.mxu0
    %s294 = scalar_lea.vmem [#allocation2], 2
    %v295 = vld [vmem:[%s294] ss:$3 sm:$0xff]
    %s296 = scalar_lea.vmem [#allocation2], 26
    %v297 = vld [vmem:[%s296] ss:$3 sm:$0xff]
    %s298 = scalar_lea.vmem [#allocation2], 50
    %v299 = vld [vmem:[%s298] ss:$3 sm:$0xff]
    %s300 = scalar_lea.vmem [#allocation2], 74
    %v301 = vld [vmem:[%s300] ss:$3 sm:$0xff]
    %s302 = scalar_lea.vmem %s1, 16
    %v303 = vld [vmem:[%s302] sm:$0xff]
    %v305 = vsel %vm67, %v295, 0
    %v308 = vsel %vm67, %v297, 0
    %v311 = vsel %vm67, %v299, 0
    %v314 = vsel %vm67, %v301, 0
    %316 = vmatprep.subr.mxu0 0.0
    %317 = vmatpush1.msra.mxu0 %v303
    %318 = vmatprep.subr.mxu0 0.0
    %319 = vmatpush1.msra.mxu0 0.0
    %320 = vmatprep.subr.mxu0 0.0
    %321 = vmatpush1.msra.mxu0 0.0
    %322 = vmatprep.subr.mxu0 0.0
    %323 = vmatpush1.msra.mxu0 0.0
    %324 = vmatprep.subr.mxu0 0.0
    %325 = vmatpush1.msra.mxu0 0.0
    %326 = vmatprep.subr.mxu0 0.0
    %327 = vmatpush1.msra.mxu0 0.0
    %328 = vmatprep.subr.mxu0 0.0
    %329 = vmatpush1.msra.mxu0 0.0
    %330 = vmatprep.subr.mxu0 0.0
    %331 = vmatpush1.msra.mxu0 0.0
    %332 = vmatprep.subr.mxu0 0.0
    %333 = vmatpush1.msra.mxu0 0.0
    %334 = vmatprep.subr.mxu0 0.0
    %335 = vmatpush1.msra.mxu0 0.0
    %336 = vmatprep.subr.mxu0 0.0
    %337 = vmatpush1.msra.mxu0 0.0
    %338 = vmatprep.subr.mxu0 0.0
    %339 = vmatpush1.msra.mxu0 0.0
    %340 = vmatprep.subr.mxu0 0.0
    %341 = vmatpush1.msra.mxu0 0.0
    %342 = vmatprep.subr.mxu0 0.0
    %343 = vmatpush1.msra.mxu0 0.0
    %344 = vmatprep.subr.mxu0 0.0
    %345 = vmatpush1.msra.mxu0 0.0
    %346 = vmatprep.subr.mxu0 0.0
    %347 = vmatpush1.msra.mxu0 0.0
    %348 = vmatprep.subr.mxu0 0.0
    %349 = vmatpush1.msra.mxu0 0.0
    %350 = vmatprep.subr.mxu0 0.0
    %351 = vmatpush1.msra.mxu0 0.0
    %352 = vmatprep.subr.mxu0 0.0
    %353 = vmatpush1.msra.mxu0 0.0
    %354 = vmatprep.subr.mxu0 0.0
    %355 = vmatpush1.msra.mxu0 0.0
    %356 = vmatprep.subr.mxu0 0.0
    %357 = vmatpush1.msra.mxu0 0.0
    %358 = vmatprep.subr.mxu0 0.0
    %359 = vmatpush1.msra.mxu0 0.0
    %360 = vmatprep.subr.mxu0 0.0
    %361 = vmatpush1.msra.mxu0 0.0
    %362 = vmatprep.subr.mxu0 0.0
    %363 = vmatpush1.msra.mxu0 0.0
    %364 = vmatprep.subr.mxu0 0.0
    %365 = vmatpush1.msra.mxu0 0.0
    %366 = vmatprep.subr.mxu0 0.0
    %367 = vmatpush1.msra.mxu0 0.0
    %368 = vmatprep.subr.mxu0 0.0
    %369 = vmatpush1.msra.mxu0 0.0
    %370 = vmatprep.subr.mxu0 0.0
    %371 = vmatpush1.msra.mxu0 0.0
    %372 = vmatprep.subr.mxu0 0.0
    %373 = vmatpush1.msra.mxu0 0.0
    %374 = vmatprep.subr.mxu0 0.0
    %375 = vmatpush1.msra.mxu0 0.0
    %376 = vmatprep.subr.mxu0 0.0
    %377 = vmatpush1.msra.mxu0 0.0
    %378 = vmatprep.subr.mxu0 0.0
    %379 = vmatpush1.msra.mxu0 0.0
    %380 = vmatprep.mubr.f32.mxu0 0.0
    %381 = vmatmul.mubr.f32.gmra.mrb[0].mxu0 %v305
    %v382 = vpop.f32.mrb[0].mxu0
    %v383 = vadd.f32 0.0, %v382
    %v384 = vpop.f32.mrb[0].mxu0
    %385 = vmatprep.mubr.f32.mxu0 0.0
    %386 = vmatmul.mubr.f32.gmra.mrb[0].mxu0 %v308
    %v387 = vpop.f32.mrb[0].mxu0
    %v388 = vadd.f32 0.0, %v387
    %v389 = vpop.f32.mrb[0].mxu0
    %390 = vmatprep.mubr.f32.mxu0 0.0
    %391 = vmatmul.mubr.f32.gmra.mrb[0].mxu0 %v311
    %v392 = vpop.f32.mrb[0].mxu0
    %v393 = vadd.f32 0.0, %v392
    %v394 = vpop.f32.mrb[0].mxu0
    %395 = vmatprep.mubr.f32.mxu0 0.0
    %396 = vmatmul.mubr.f32.gmra.mrb[0].mxu0 %v314
    %v397 = vpop.f32.mrb[0].mxu0
    %v398 = vadd.f32 0.0, %v397
    %v399 = vpop.f32.mrb[0].mxu0
    %400 = vdwg.mxu0
    %v401 = vadd.f32 %v276, %v383
    %v402 = vadd.f32 %v281, %v388
    %v403 = vadd.f32 %v286, %v393
    %v404 = vadd.f32 %v291, %v398
    %s405 = scalar_lea.vmem [#allocation2], 3
    %v406 = vld [vmem:[%s405] ss:$3 sm:$0xff]
    %s407 = scalar_lea.vmem [#allocation2], 27
    %v408 = vld [vmem:[%s407] ss:$3 sm:$0xff]
    %s409 = scalar_lea.vmem [#allocation2], 51
    %v410 = vld [vmem:[%s409] ss:$3 sm:$0xff]
    %s411 = scalar_lea.vmem [#allocation2], 75
    %v412 = vld [vmem:[%s411] ss:$3 sm:$0xff]
    %s413 = scalar_lea.vmem %s1, 24
    %v414 = vld [vmem:[%s413] sm:$0xff]
    %v416 = vsel %vm67, %v406, 0
    %v419 = vsel %vm67, %v408, 0
    %v422 = vsel %vm67, %v410, 0
    %v425 = vsel %vm67, %v412, 0
    %427 = vmatprep.subr.mxu0 0.0
    %428 = vmatpush1.msra.mxu0 %v414
    %429 = vmatprep.subr.mxu0 0.0
    %430 = vmatpush1.msra.mxu0 0.0
    %431 = vmatprep.subr.mxu0 0.0
    %432 = vmatpush1.msra.mxu0 0.0
    %433 = vmatprep.subr.mxu0 0.0
    %434 = vmatpush1.msra.mxu0 0.0
    %435 = vmatprep.subr.mxu0 0.0
    %436 = vmatpush1.msra.mxu0 0.0
    %437 = vmatprep.subr.mxu0 0.0
    %438 = vmatpush1.msra.mxu0 0.0
    %439 = vmatprep.subr.mxu0 0.0
    %440 = vmatpush1.msra.mxu0 0.0
    %441 = vmatprep.subr.mxu0 0.0
    %442 = vmatpush1.msra.mxu0 0.0
    %443 = vmatprep.subr.mxu0 0.0
    %444 = vmatpush1.msra.mxu0 0.0
    %445 = vmatprep.subr.mxu0 0.0
    %446 = vmatpush1.msra.mxu0 0.0
    %447 = vmatprep.subr.mxu0 0.0
    %448 = vmatpush1.msra.mxu0 0.0
    %449 = vmatprep.subr.mxu0 0.0
    %450 = vmatpush1.msra.mxu0 0.0
    %451 = vmatprep.subr.mxu0 0.0
    %452 = vmatpush1.msra.mxu0 0.0
    %453 = vmatprep.subr.mxu0 0.0
    %454 = vmatpush1.msra.mxu0 0.0
    %455 = vmatprep.subr.mxu0 0.0
    %456 = vmatpush1.msra.mxu0 0.0
    %457 = vmatprep.subr.mxu0 0.0
    %458 = vmatpush1.msra.mxu0 0.0
    %459 = vmatprep.subr.mxu0 0.0
    %460 = vmatpush1.msra.mxu0 0.0
    %461 = vmatprep.subr.mxu0 0.0
    %462 = vmatpush1.msra.mxu0 0.0
    %463 = vmatprep.subr.mxu0 0.0
    %464 = vmatpush1.msra.mxu0 0.0
    %465 = vmatprep.subr.mxu0 0.0
    %466 = vmatpush1.msra.mxu0 0.0
    %467 = vmatprep.subr.mxu0 0.0
    %468 = vmatpush1.msra.mxu0 0.0
    %469 = vmatprep.subr.mxu0 0.0
    %470 = vmatpush1.msra.mxu0 0.0
    %471 = vmatprep.subr.mxu0 0.0
    %472 = vmatpush1.msra.mxu0 0.0
    %473 = vmatprep.subr.mxu0 0.0
    %474 = vmatpush1.msra.mxu0 0.0
    %475 = vmatprep.subr.mxu0 0.0
    %476 = vmatpush1.msra.mxu0 0.0
    %477 = vmatprep.subr.mxu0 0.0
    %478 = vmatpush1.msra.mxu0 0.0
    %479 = vmatprep.subr.mxu0 0.0
    %480 = vmatpush1.msra.mxu0 0.0
    %481 = vmatprep.subr.mxu0 0.0
    %482 = vmatpush1.msra.mxu0 0.0
    %483 = vmatprep.subr.mxu0 0.0
    %484 = vmatpush1.msra.mxu0 0.0
    %485 = vmatprep.subr.mxu0 0.0
    %486 = vmatpush1.msra.mxu0 0.0
    %487 = vmatprep.subr.mxu0 0.0
    %488 = vmatpush1.msra.mxu0 0.0
    %489 = vmatprep.subr.mxu0 0.0
    %490 = vmatpush1.msra.mxu0 0.0
    %491 = vmatprep.mubr.f32.mxu0 0.0
    %492 = vmatmul.mubr.f32.gmra.mrb[0].mxu0 %v416
    %v493 = vpop.f32.mrb[0].mxu0
    %v494 = vadd.f32 0.0, %v493
    %v495 = vpop.f32.mrb[0].mxu0
    %496 = vmatprep.mubr.f32.mxu0 0.0
    %497 = vmatmul.mubr.f32.gmra.mrb[0].mxu0 %v419
    %v498 = vpop.f32.mrb[0].mxu0
    %v499 = vadd.f32 0.0, %v498
    %v500 = vpop.f32.mrb[0].mxu0
    %501 = vmatprep.mubr.f32.mxu0 0.0
    %502 = vmatmul.mubr.f32.gmra.mrb[0].mxu0 %v422
    %v503 = vpop.f32.mrb[0].mxu0
    %v504 = vadd.f32 0.0, %v503
    %v505 = vpop.f32.mrb[0].mxu0
    %506 = vmatprep.mubr.f32.mxu0 0.0
    %507 = vmatmul.mubr.f32.gmra.mrb[0].mxu0 %v425
    %v508 = vpop.f32.mrb[0].mxu0
    %v509 = vadd.f32 0.0, %v508
    %v510 = vpop.f32.mrb[0].mxu0
    %511 = vdwg.mxu0
    %v512 = vadd.f32 %v401, %v494
    %v513 = vadd.f32 %v402, %v499
    %v514 = vadd.f32 %v403, %v504
    %v515 = vadd.f32 %v404, %v509
    %s516 = scalar_lea.vmem [#allocation2], 4
    %v517 = vld [vmem:[%s516] ss:$3 sm:$0xff]
    %s518 = scalar_lea.vmem [#allocation2], 28
    %v519 = vld [vmem:[%s518] ss:$3 sm:$0xff]
    %s520 = scalar_lea.vmem [#allocation2], 52
    %v521 = vld [vmem:[%s520] ss:$3 sm:$0xff]
    %s522 = scalar_lea.vmem [#allocation2], 76
    %v523 = vld [vmem:[%s522] ss:$3 sm:$0xff]
    %s524 = scalar_lea.vmem %s1, 32
    %v525 = vld [vmem:[%s524] sm:$0xff]
    %v527 = vsel %vm67, %v517, 0
    %v530 = vsel %vm67, %v519, 0
    %v533 = vsel %vm67, %v521, 0
    %v536 = vsel %vm67, %v523, 0
    %538 = vmatprep.subr.mxu0 0.0
    %539 = vmatpush1.msra.mxu0 %v525
    %540 = vmatprep.subr.mxu0 0.0
    %541 = vmatpush1.msra.mxu0 0.0
    %542 = vmatprep.subr.mxu0 0.0
    %543 = vmatpush1.msra.mxu0 0.0
    %544 = vmatprep.subr.mxu0 0.0
    %545 = vmatpush1.msra.mxu0 0.0
    %546 = vmatprep.subr.mxu0 0.0
    %547 = vmatpush1.msra.mxu0 0.0
    %548 = vmatprep.subr.mxu0 0.0
    %549 = vmatpush1.msra.mxu0 0.0
    %550 = vmatprep.subr.mxu0 0.0
    %551 = vmatpush1.msra.mxu0 0.0
    %552 = vmatprep.subr.mxu0 0.0
    %553 = vmatpush1.msra.mxu0 0.0
    %554 = vmatprep.subr.mxu0 0.0
    %555 = vmatpush1.msra.mxu0 0.0
    %556 = vmatprep.subr.mxu0 0.0
    %557 = vmatpush1.msra.mxu0 0.0
    %558 = vmatprep.subr.mxu0 0.0
    %559 = vmatpush1.msra.mxu0 0.0
    %560 = vmatprep.subr.mxu0 0.0
    %561 = vmatpush1.msra.mxu0 0.0
    %562 = vmatprep.subr.mxu0 0.0
    %563 = vmatpush1.msra.mxu0 0.0
    %564 = vmatprep.subr.mxu0 0.0
    %565 = vmatpush1.msra.mxu0 0.0
    %566 = vmatprep.subr.mxu0 0.0
    %567 = vmatpush1.msra.mxu0 0.0
    %568 = vmatprep.subr.mxu0 0.0
    %569 = vmatpush1.msra.mxu0 0.0
    %570 = vmatprep.subr.mxu0 0.0
    %571 = vmatpush1.msra.mxu0 0.0
    %572 = vmatprep.subr.mxu0 0.0
    %573 = vmatpush1.msra.mxu0 0.0
    %574 = vmatprep.subr.mxu0 0.0
    %575 = vmatpush1.msra.mxu0 0.0
    %576 = vmatprep.subr.mxu0 0.0
    %577 = vmatpush1.msra.mxu0 0.0
    %578 = vmatprep.subr.mxu0 0.0
    %579 = vmatpush1.msra.mxu0 0.0
    %580 = vmatprep.subr.mxu0 0.0
    %581 = vmatpush1.msra.mxu0 0.0
    %582 = vmatprep.subr.mxu0 0.0
    %583 = vmatpush1.msra.mxu0 0.0
    %584 = vmatprep.subr.mxu0 0.0
    %585 = vmatpush1.msra.mxu0 0.0
    %586 = vmatprep.subr.mxu0 0.0
    %587 = vmatpush1.msra.mxu0 0.0
    %588 = vmatprep.subr.mxu0 0.0
    %589 = vmatpush1.msra.mxu0 0.0
    %590 = vmatprep.subr.mxu0 0.0
    %591 = vmatpush1.msra.mxu0 0.0
    %592 = vmatprep.subr.mxu0 0.0
    %593 = vmatpush1.msra.mxu0 0.0
    %594 = vmatprep.subr.mxu0 0.0
    %595 = vmatpush1.msra.mxu0 0.0
    %596 = vmatprep.subr.mxu0 0.0
    %597 = vmatpush1.msra.mxu0 0.0
    %598 = vmatprep.subr.mxu0 0.0
    %599 = vmatpush1.msra.mxu0 0.0
    %600 = vmatprep.subr.mxu0 0.0
    %601 = vmatpush1.msra.mxu0 0.0
    %602 = vmatprep.mubr.f32.mxu0 0.0
    %603 = vmatmul.mubr.f32.gmra.mrb[0].mxu0 %v527
    %v604 = vpop.f32.mrb[0].mxu0
    %v605 = vadd.f32 0.0, %v604
    %v606 = vpop.f32.mrb[0].mxu0
    %607 = vmatprep.mubr.f32.mxu0 0.0
    %608 = vmatmul.mubr.f32.gmra.mrb[0].mxu0 %v530
    %v609 = vpop.f32.mrb[0].mxu0
    %v610 = vadd.f32 0.0, %v609
    %v611 = vpop.f32.mrb[0].mxu0
    %612 = vmatprep.mubr.f32.mxu0 0.0
    %613 = vmatmul.mubr.f32.gmra.mrb[0].mxu0 %v533
    %v614 = vpop.f32.mrb[0].mxu0
    %v615 = vadd.f32 0.0, %v614
    %v616 = vpop.f32.mrb[0].mxu0
    %617 = vmatprep.mubr.f32.mxu0 0.0
    %618 = vmatmul.mubr.f32.gmra.mrb[0].mxu0 %v536
    %v619 = vpop.f32.mrb[0].mxu0
    %v620 = vadd.f32 0.0, %v619
    %v621 = vpop.f32.mrb[0].mxu0
    %622 = vdwg.mxu0
    %v623 = vadd.f32 %v512, %v605
    %v624 = vadd.f32 %v513, %v610
    %v625 = vadd.f32 %v514, %v615
    %v626 = vadd.f32 %v515, %v620
    %v628 = vlaneseq
    %v629 = vshrl.u32 %v628, 7
    %v630 = vsub.s32 0, %v629
    %v631 = vrot.slane %v81, %v630
    %v633 = vadd.f32 %v623, %v631
    %v634 = vadd.f32 %v624, %v631
    %v635 = vadd.f32 %v625, %v631
    %v636 = vadd.f32 %v626, %v631
    %vm637 = vcmp.gt.f32.partialorder %v633, 0.0
    %vm638 = vcmp.gt.f32.partialorder %v634, 0.0
    %vm639 = vcmp.gt.f32.partialorder %v635, 0.0
    %vm640 = vcmp.gt.f32.partialorder %v636, 0.0
    %v641 = vmul.f32 %v633, 0.1
    %v642 = vmul.f32 %v634, 0.1
    %v643 = vmul.f32 %v635, 0.1
    %v644 = vmul.f32 %v636, 0.1
    %v645 = vsel %vm637, %v633, %v641
    %v646 = vsel %vm638, %v634, %v642
    %v647 = vsel %vm639, %v635, %v643
    %v648 = vsel %vm640, %v636, %v644
    %vm649 = vcmask 523264
    %650 = vst.msk [vmem:[#allocation9] sm:$0xff] %vm649, %v645
    %651 = vst.msk [vmem:[#allocation9 + $0x8] sm:$0xff] %vm649, %v646
    %652 = vst.msk [vmem:[#allocation9 + $0x10] sm:$0xff] %vm649, %v647
    %653 = vst.msk [vmem:[#allocation9 + $0x18] sm:$0xff] %vm649, %v648
    %vm654 = vcmask 517120
    %655 = vst.msk [vmem:[#allocation3] sm:$0x3] %vm654, 0.0
    %vm656 = vcmask 516096
    %657 = vst.msk [vmem:[#allocation3 + $0x22] sm:$0x1] %vm656, 0.0
    %658 = vst.msk [vmem:[#allocation3 + $0x2] sm:$0xff] %vm649, %v645
    %659 = vst.msk [vmem:[#allocation3 + $0xa] sm:$0xff] %vm649, %v646
    %660 = vst.msk [vmem:[#allocation3 + $0x12] sm:$0xff] %vm649, %v647
    %661 = vst.msk [vmem:[#allocation3 + $0x1a] sm:$0xff] %vm649, %v648
    %v662 = vld [vmem:[%s6] sm:$0x1]
    %v663 = vld [vmem:[#allocation3] ss:$3 sm:$0xff]
    %s664 = scalar_lea.vmem [#allocation3], 24
    %v665 = vld [vmem:[%s664] ss:$3 sm:$0x7]
    %v666 = vld [vmem:[%s2] sm:$0xff]
    %v667 = vld [vmem:[%s2 + $0x8] sm:$0xff]
    %v668 = vld [vmem:[%s2 + $0x10] sm:$0xff]
    %v669 = vld [vmem:[%s2 + $0x18] sm:$0xff]
    %v670 = vld [vmem:[%s2 + $0x20] sm:$0xff]
    %v671 = vld [vmem:[%s2 + $0x28] sm:$0xff]
    %v672 = vld [vmem:[%s2 + $0x30] sm:$0xff]
    %v673 = vld [vmem:[%s2 + $0x38] sm:$0xff]
    %s674 = scalar_lea.vmem [#allocation3], 1
    %v675 = vld [vmem:[%s674] ss:$3 sm:$0xff]
    %s676 = scalar_lea.vmem [#allocation3], 25
    %v677 = vld [vmem:[%s676] ss:$3 sm:$0x7]
    %s678 = scalar_lea.vmem %s2, 64
    %v679 = vld [vmem:[%s678] sm:$0xff]
    %v680 = vld [vmem:[%s678 + $0x8] sm:$0xff]
    %v681 = vld [vmem:[%s678 + $0x10] sm:$0xff]
    %v682 = vld [vmem:[%s678 + $0x18] sm:$0xff]
    %v683 = vld [vmem:[%s678 + $0x20] sm:$0xff]
    %v684 = vld [vmem:[%s678 + $0x28] sm:$0xff]
    %v685 = vld [vmem:[%s678 + $0x30] sm:$0xff]
    %v686 = vld [vmem:[%s678 + $0x38] sm:$0xff]
    %v688 = vsel %vm649, %v675, 0
    %v691 = vsel %vm649, %v677, 0
    %693 = vmatprep.subr.mxu0 0.0
    %694 = vmatpush1.msra.mxu0 %v679
    %695 = vmatprep.subr.mxu0 0.0
    %696 = vmatpush1.msra.mxu0 %v680
    %697 = vmatprep.subr.mxu0 0.0
    %698 = vmatpush1.msra.mxu0 %v681
    %699 = vmatprep.subr.mxu0 0.0
    %700 = vmatpush1.msra.mxu0 %v682
    %701 = vmatprep.subr.mxu0 0.0
    %702 = vmatpush1.msra.mxu0 %v683
    %703 = vmatprep.subr.mxu0 0.0
    %704 = vmatpush1.msra.mxu0 %v684
    %705 = vmatprep.subr.mxu0 0.0
    %706 = vmatpush1.msra.mxu0 %v685
    %707 = vmatprep.subr.mxu0 0.0
    %708 = vmatpush1.msra.mxu0 %v686
    %709 = vmatprep.subr.mxu0 0.0
    %710 = vmatpush1.msra.mxu0 0.0
    %711 = vmatprep.subr.mxu0 0.0
    %712 = vmatpush1.msra.mxu0 0.0
    %713 = vmatprep.subr.mxu0 0.0
    %714 = vmatpush1.msra.mxu0 0.0
    %715 = vmatprep.subr.mxu0 0.0
    %716 = vmatpush1.msra.mxu0 0.0
    %717 = vmatprep.subr.mxu0 0.0
    %718 = vmatpush1.msra.mxu0 0.0
    %719 = vmatprep.subr.mxu0 0.0
    %720 = vmatpush1.msra.mxu0 0.0
    %721 = vmatprep.subr.mxu0 0.0
    %722 = vmatpush1.msra.mxu0 0.0
    %723 = vmatprep.subr.mxu0 0.0
    %724 = vmatpush1.msra.mxu0 0.0
    %725 = vmatprep.subr.mxu0 0.0
    %726 = vmatpush1.msra.mxu0 0.0
    %727 = vmatprep.subr.mxu0 0.0
    %728 = vmatpush1.msra.mxu0 0.0
    %729 = vmatprep.subr.mxu0 0.0
    %730 = vmatpush1.msra.mxu0 0.0
    %731 = vmatprep.subr.mxu0 0.0
    %732 = vmatpush1.msra.mxu0 0.0
    %733 = vmatprep.subr.mxu0 0.0
    %734 = vmatpush1.msra.mxu0 0.0
    %735 = vmatprep.subr.mxu0 0.0
    %736 = vmatpush1.msra.mxu0 0.0
    %737 = vmatprep.subr.mxu0 0.0
    %738 = vmatpush1.msra.mxu0 0.0
    %739 = vmatprep.subr.mxu0 0.0
    %740 = vmatpush1.msra.mxu0 0.0
    %741 = vmatprep.subr.mxu0 0.0
    %742 = vmatpush1.msra.mxu0 0.0
    %743 = vmatprep.subr.mxu0 0.0
    %744 = vmatpush1.msra.mxu0 0.0
    %745 = vmatprep.subr.mxu0 0.0
    %746 = vmatpush1.msra.mxu0 0.0
    %747 = vmatprep.subr.mxu0 0.0
    %748 = vmatpush1.msra.mxu0 0.0
    %749 = vmatprep.subr.mxu0 0.0
    %750 = vmatpush1.msra.mxu0 0.0
    %751 = vmatprep.subr.mxu0 0.0
    %752 = vmatpush1.msra.mxu0 0.0
    %753 = vmatprep.subr.mxu0 0.0
    %754 = vmatpush1.msra.mxu0 0.0
    %755 = vmatprep.subr.mxu0 0.0
    %756 = vmatpush1.msra.mxu0 0.0
    %757 = vmatprep.mubr.f32.mxu0 0.0
    %758 = vmatmul.mubr.f32.gmra.mrb[0].mxu0 %v688
    %v759 = vpop.f32.mrb[0].mxu0
    %v760 = vadd.f32 0.0, %v759
    %v761 = vpop.f32.mrb[0].mxu0
    %762 = vmatprep.mubr.f32.mxu0 0.0
    %763 = vmatmul.mubr.f32.gmra.mrb[0].mxu0 %v691
    %v764 = vpop.f32.mrb[0].mxu0
    %v765 = vadd.f32 0.0, %v764
    %v766 = vpop.f32.mrb[0].mxu0
    %767 = vdwg.mxu0
    %v769 = vsel %vm649, %v663, 0
    %v772 = vsel %vm649, %v665, 0
    %774 = vmatprep.subr.mxu0 0.0
    %775 = vmatpush1.msra.mxu0 %v666
    %776 = vmatprep.subr.mxu0 0.0
    %777 = vmatpush1.msra.mxu0 %v667
    %778 = vmatprep.subr.mxu0 0.0
    %779 = vmatpush1.msra.mxu0 %v668
    %780 = vmatprep.subr.mxu0 0.0
    %781 = vmatpush1.msra.mxu0 %v669
    %782 = vmatprep.subr.mxu0 0.0
    %783 = vmatpush1.msra.mxu0 %v670
    %784 = vmatprep.subr.mxu0 0.0
    %785 = vmatpush1.msra.mxu0 %v671
    %786 = vmatprep.subr.mxu0 0.0
    %787 = vmatpush1.msra.mxu0 %v672
    %788 = vmatprep.subr.mxu0 0.0
    %789 = vmatpush1.msra.mxu0 %v673
    %790 = vmatprep.subr.mxu0 0.0
    %791 = vmatpush1.msra.mxu0 0.0
    %792 = vmatprep.subr.mxu0 0.0
    %793 = vmatpush1.msra.mxu0 0.0
    %794 = vmatprep.subr.mxu0 0.0
    %795 = vmatpush1.msra.mxu0 0.0
    %796 = vmatprep.subr.mxu0 0.0
    %797 = vmatpush1.msra.mxu0 0.0
    %798 = vmatprep.subr.mxu0 0.0
    %799 = vmatpush1.msra.mxu0 0.0
    %800 = vmatprep.subr.mxu0 0.0
    %801 = vmatpush1.msra.mxu0 0.0
    %802 = vmatprep.subr.mxu0 0.0
    %803 = vmatpush1.msra.mxu0 0.0
    %804 = vmatprep.subr.mxu0 0.0
    %805 = vmatpush1.msra.mxu0 0.0
    %806 = vmatprep.subr.mxu0 0.0
    %807 = vmatpush1.msra.mxu0 0.0
    %808 = vmatprep.subr.mxu0 0.0
    %809 = vmatpush1.msra.mxu0 0.0
    %810 = vmatprep.subr.mxu0 0.0
    %811 = vmatpush1.msra.mxu0 0.0
    %812 = vmatprep.subr.mxu0 0.0
    %813 = vmatpush1.msra.mxu0 0.0
    %814 = vmatprep.subr.mxu0 0.0
    %815 = vmatpush1.msra.mxu0 0.0
    %816 = vmatprep.subr.mxu0 0.0
    %817 = vmatpush1.msra.mxu0 0.0
    %818 = vmatprep.subr.mxu0 0.0
    %819 = vmatpush1.msra.mxu0 0.0
    %820 = vmatprep.subr.mxu0 0.0
    %821 = vmatpush1.msra.mxu0 0.0
    %822 = vmatprep.subr.mxu0 0.0
    %823 = vmatpush1.msra.mxu0 0.0
    %824 = vmatprep.subr.mxu0 0.0
    %825 = vmatpush1.msra.mxu0 0.0
    %826 = vmatprep.subr.mxu0 0.0
    %827 = vmatpush1.msra.mxu0 0.0
    %828 = vmatprep.subr.mxu0 0.0
    %829 = vmatpush1.msra.mxu0 0.0
    %830 = vmatprep.subr.mxu0 0.0
    %831 = vmatpush1.msra.mxu0 0.0
    %832 = vmatprep.subr.mxu0 0.0
    %833 = vmatpush1.msra.mxu0 0.0
    %834 = vmatprep.subr.mxu0 0.0
    %835 = vmatpush1.msra.mxu0 0.0
    %836 = vmatprep.subr.mxu0 0.0
    %837 = vmatpush1.msra.mxu0 0.0
    %838 = vmatprep.mubr.f32.mxu0 0.0
    %839 = vmatmul.mubr.f32.gmra.mrb[0].mxu0 %v769
    %v840 = vpop.f32.mrb[0].mxu0
    %v841 = vadd.f32 %v760, %v840
    %v842 = vpop.f32.mrb[0].mxu0
    %843 = vmatprep.mubr.f32.mxu0 0.0
    %844 = vmatmul.mubr.f32.gmra.mrb[0].mxu0 %v772
    %v845 = vpop.f32.mrb[0].mxu0
    %v846 = vadd.f32 %v765, %v845
    %v847 = vpop.f32.mrb[0].mxu0
    %848 = vdwg.mxu0
    %s849 = scalar_lea.vmem [#allocation3], 2
    %v850 = vld [vmem:[%s849] ss:$3 sm:$0xff]
    %s851 = scalar_lea.vmem [#allocation3], 26
    %v852 = vld [vmem:[%s851] ss:$3 sm:$0x7]
    %s853 = scalar_lea.vmem %s2, 128
    %v854 = vld [vmem:[%s853] sm:$0xff]
    %v855 = vld [vmem:[%s853 + $0x8] sm:$0xff]
    %v856 = vld [vmem:[%s853 + $0x10] sm:$0xff]
    %v857 = vld [vmem:[%s853 + $0x18] sm:$0xff]
    %v858 = vld [vmem:[%s853 + $0x20] sm:$0xff]
    %v859 = vld [vmem:[%s853 + $0x28] sm:$0xff]
    %v860 = vld [vmem:[%s853 + $0x30] sm:$0xff]
    %v861 = vld [vmem:[%s853 + $0x38] sm:$0xff]
    %v863 = vsel %vm649, %v850, 0
    %v866 = vsel %vm649, %v852, 0
    %868 = vmatprep.subr.mxu0 0.0
    %869 = vmatpush1.msra.mxu0 %v854
    %870 = vmatprep.subr.mxu0 0.0
    %871 = vmatpush1.msra.mxu0 %v855
    %872 = vmatprep.subr.mxu0 0.0
    %873 = vmatpush1.msra.mxu0 %v856
    %874 = vmatprep.subr.mxu0 0.0
    %875 = vmatpush1.msra.mxu0 %v857
    %876 = vmatprep.subr.mxu0 0.0
    %877 = vmatpush1.msra.mxu0 %v858
    %878 = vmatprep.subr.mxu0 0.0
    %879 = vmatpush1.msra.mxu0 %v859
    %880 = vmatprep.subr.mxu0 0.0
    %881 = vmatpush1.msra.mxu0 %v860
    %882 = vmatprep.subr.mxu0 0.0
    %883 = vmatpush1.msra.mxu0 %v861
    %884 = vmatprep.subr.mxu0 0.0
    %885 = vmatpush1.msra.mxu0 0.0
    %886 = vmatprep.subr.mxu0 0.0
    %887 = vmatpush1.msra.mxu0 0.0
    %888 = vmatprep.subr.mxu0 0.0
    %889 = vmatpush1.msra.mxu0 0.0
    %890 = vmatprep.subr.mxu0 0.0
    %891 = vmatpush1.msra.mxu0 0.0
    %892 = vmatprep.subr.mxu0 0.0
    %893 = vmatpush1.msra.mxu0 0.0
    %894 = vmatprep.subr.mxu0 0.0
    %895 = vmatpush1.msra.mxu0 0.0
    %896 = vmatprep.subr.mxu0 0.0
    %897 = vmatpush1.msra.mxu0 0.0
    %898 = vmatprep.subr.mxu0 0.0
    %899 = vmatpush1.msra.mxu0 0.0
    %900 = vmatprep.subr.mxu0 0.0
    %901 = vmatpush1.msra.mxu0 0.0
    %902 = vmatprep.subr.mxu0 0.0
    %903 = vmatpush1.msra.mxu0 0.0
    %904 = vmatprep.subr.mxu0 0.0
    %905 = vmatpush1.msra.mxu0 0.0
    %906 = vmatprep.subr.mxu0 0.0
    %907 = vmatpush1.msra.mxu0 0.0
    %908 = vmatprep.subr.mxu0 0.0
    %909 = vmatpush1.msra.mxu0 0.0
    %910 = vmatprep.subr.mxu0 0.0
    %911 = vmatpush1.msra.mxu0 0.0
    %912 = vmatprep.subr.mxu0 0.0
    %913 = vmatpush1.msra.mxu0 0.0
    %914 = vmatprep.subr.mxu0 0.0
    %915 = vmatpush1.msra.mxu0 0.0
    %916 = vmatprep.subr.mxu0 0.0
    %917 = vmatpush1.msra.mxu0 0.0
    %918 = vmatprep.subr.mxu0 0.0
    %919 = vmatpush1.msra.mxu0 0.0
    %920 = vmatprep.subr.mxu0 0.0
    %921 = vmatpush1.msra.mxu0 0.0
    %922 = vmatprep.subr.mxu0 0.0
    %923 = vmatpush1.msra.mxu0 0.0
    %924 = vmatprep.subr.mxu0 0.0
    %925 = vmatpush1.msra.mxu0 0.0
    %926 = vmatprep.subr.mxu0 0.0
    %927 = vmatpush1.msra.mxu0 0.0
    %928 = vmatprep.subr.mxu0 0.0
    %929 = vmatpush1.msra.mxu0 0.0
    %930 = vmatprep.subr.mxu0 0.0
    %931 = vmatpush1.msra.mxu0 0.0
    %932 = vmatprep.mubr.f32.mxu0 0.0
    %933 = vmatmul.mubr.f32.gmra.mrb[0].mxu0 %v863
    %v934 = vpop.f32.mrb[0].mxu0
    %v935 = vadd.f32 0.0, %v934
    %v936 = vpop.f32.mrb[0].mxu0
    %937 = vmatprep.mubr.f32.mxu0 0.0
    %938 = vmatmul.mubr.f32.gmra.mrb[0].mxu0 %v866
    %v939 = vpop.f32.mrb[0].mxu0
    %v940 = vadd.f32 0.0, %v939
    %v941 = vpop.f32.mrb[0].mxu0
    %942 = vdwg.mxu0
    %v943 = vadd.f32 %v841, %v935
    %v944 = vadd.f32 %v846, %v940
    %s945 = scalar_lea.vmem [#allocation3], 3
    %v946 = vld [vmem:[%s945] ss:$3 sm:$0xff]
    %s947 = scalar_lea.vmem [#allocation3], 27
    %v948 = vld [vmem:[%s947] ss:$3 sm:$0x7]
    %s949 = scalar_lea.vmem %s2, 192
    %v950 = vld [vmem:[%s949] sm:$0xff]
    %v951 = vld [vmem:[%s949 + $0x8] sm:$0xff]
    %v952 = vld [vmem:[%s949 + $0x10] sm:$0xff]
    %v953 = vld [vmem:[%s949 + $0x18] sm:$0xff]
    %v954 = vld [vmem:[%s949 + $0x20] sm:$0xff]
    %v955 = vld [vmem:[%s949 + $0x28] sm:$0xff]
    %v956 = vld [vmem:[%s949 + $0x30] sm:$0xff]
    %v957 = vld [vmem:[%s949 + $0x38] sm:$0xff]
    %v959 = vsel %vm649, %v946, 0
    %v962 = vsel %vm649, %v948, 0
    %964 = vmatprep.subr.mxu0 0.0
    %965 = vmatpush1.msra.mxu0 %v950
    %966 = vmatprep.subr.mxu0 0.0
    %967 = vmatpush1.msra.mxu0 %v951
    %968 = vmatprep.subr.mxu0 0.0
    %969 = vmatpush1.msra.mxu0 %v952
    %970 = vmatprep.subr.mxu0 0.0
    %971 = vmatpush1.msra.mxu0 %v953
    %972 = vmatprep.subr.mxu0 0.0
    %973 = vmatpush1.msra.mxu0 %v954
    %974 = vmatprep.subr.mxu0 0.0
    %975 = vmatpush1.msra.mxu0 %v955
    %976 = vmatprep.subr.mxu0 0.0
    %977 = vmatpush1.msra.mxu0 %v956
    %978 = vmatprep.subr.mxu0 0.0
    %979 = vmatpush1.msra.mxu0 %v957
    %980 = vmatprep.subr.mxu0 0.0
    %981 = vmatpush1.msra.mxu0 0.0
    %982 = vmatprep.subr.mxu0 0.0
    %983 = vmatpush1.msra.mxu0 0.0
    %984 = vmatprep.subr.mxu0 0.0
    %985 = vmatpush1.msra.mxu0 0.0
    %986 = vmatprep.subr.mxu0 0.0
    %987 = vmatpush1.msra.mxu0 0.0
    %988 = vmatprep.subr.mxu0 0.0
    %989 = vmatpush1.msra.mxu0 0.0
    %990 = vmatprep.subr.mxu0 0.0
    %991 = vmatpush1.msra.mxu0 0.0
    %992 = vmatprep.subr.mxu0 0.0
    %993 = vmatpush1.msra.mxu0 0.0
    %994 = vmatprep.subr.mxu0 0.0
    %995 = vmatpush1.msra.mxu0 0.0
    %996 = vmatprep.subr.mxu0 0.0
    %997 = vmatpush1.msra.mxu0 0.0
    %998 = vmatprep.subr.mxu0 0.0
    %999 = vmatpush1.msra.mxu0 0.0
    %1000 = vmatprep.subr.mxu0 0.0
    %1001 = vmatpush1.msra.mxu0 0.0
    %1002 = vmatprep.subr.mxu0 0.0
    %1003 = vmatpush1.msra.mxu0 0.0
    %1004 = vmatprep.subr.mxu0 0.0
    %1005 = vmatpush1.msra.mxu0 0.0
    %1006 = vmatprep.subr.mxu0 0.0
    %1007 = vmatpush1.msra.mxu0 0.0
    %1008 = vmatprep.subr.mxu0 0.0
    %1009 = vmatpush1.msra.mxu0 0.0
    %1010 = vmatprep.subr.mxu0 0.0
    %1011 = vmatpush1.msra.mxu0 0.0
    %1012 = vmatprep.subr.mxu0 0.0
    %1013 = vmatpush1.msra.mxu0 0.0
    %1014 = vmatprep.subr.mxu0 0.0
    %1015 = vmatpush1.msra.mxu0 0.0
    %1016 = vmatprep.subr.mxu0 0.0
    %1017 = vmatpush1.msra.mxu0 0.0
    %1018 = vmatprep.subr.mxu0 0.0
    %1019 = vmatpush1.msra.mxu0 0.0
    %1020 = vmatprep.subr.mxu0 0.0
    %1021 = vmatpush1.msra.mxu0 0.0
    %1022 = vmatprep.subr.mxu0 0.0
    %1023 = vmatpush1.msra.mxu0 0.0
    %1024 = vmatprep.subr.mxu0 0.0
    %1025 = vmatpush1.msra.mxu0 0.0
    %1026 = vmatprep.subr.mxu0 0.0
    %1027 = vmatpush1.msra.mxu0 0.0
    %1028 = vmatprep.mubr.f32.mxu0 0.0
    %1029 = vmatmul.mubr.f32.gmra.mrb[0].mxu0 %v959
    %v1030 = vpop.f32.mrb[0].mxu0
    %v1031 = vadd.f32 0.0, %v1030
    %v1032 = vpop.f32.mrb[0].mxu0
    %1033 = vmatprep.mubr.f32.mxu0 0.0
    %1034 = vmatmul.mubr.f32.gmra.mrb[0].mxu0 %v962
    %v1035 = vpop.f32.mrb[0].mxu0
    %v1036 = vadd.f32 0.0, %v1035
    %v1037 = vpop.f32.mrb[0].mxu0
    %1038 = vdwg.mxu0
    %v1039 = vadd.f32 %v943, %v1031
    %v1040 = vadd.f32 %v944, %v1036
    %s1041 = scalar_lea.vmem [#allocation3], 4
    %v1042 = vld [vmem:[%s1041] ss:$3 sm:$0xff]
    %s1043 = scalar_lea.vmem [#allocation3], 28
    %v1044 = vld [vmem:[%s1043] ss:$3 sm:$0x7]
    %s1045 = scalar_lea.vmem %s2, 256
    %v1046 = vld [vmem:[%s1045] sm:$0xff]
    %v1047 = vld [vmem:[%s1045 + $0x8] sm:$0xff]
    %v1048 = vld [vmem:[%s1045 + $0x10] sm:$0xff]
    %v1049 = vld [vmem:[%s1045 + $0x18] sm:$0xff]
    %v1050 = vld [vmem:[%s1045 + $0x20] sm:$0xff]
    %v1051 = vld [vmem:[%s1045 + $0x28] sm:$0xff]
    %v1052 = vld [vmem:[%s1045 + $0x30] sm:$0xff]
    %v1053 = vld [vmem:[%s1045 + $0x38] sm:$0xff]
    %v1055 = vsel %vm649, %v1042, 0
    %v1058 = vsel %vm649, %v1044, 0
    %1060 = vmatprep.subr.mxu0 0.0
    %1061 = vmatpush1.msra.mxu0 %v1046
    %1062 = vmatprep.subr.mxu0 0.0
    %1063 = vmatpush1.msra.mxu0 %v1047
    %1064 = vmatprep.subr.mxu0 0.0
    %1065 = vmatpush1.msra.mxu0 %v1048
    %1066 = vmatprep.subr.mxu0 0.0
    %1067 = vmatpush1.msra.mxu0 %v1049
    %1068 = vmatprep.subr.mxu0 0.0
    %1069 = vmatpush1.msra.mxu0 %v1050
    %1070 = vmatprep.subr.mxu0 0.0
    %1071 = vmatpush1.msra.mxu0 %v1051
    %1072 = vmatprep.subr.mxu0 0.0
    %1073 = vmatpush1.msra.mxu0 %v1052
    %1074 = vmatprep.subr.mxu0 0.0
    %1075 = vmatpush1.msra.mxu0 %v1053
    %1076 = vmatprep.subr.mxu0 0.0
    %1077 = vmatpush1.msra.mxu0 0.0
    %1078 = vmatprep.subr.mxu0 0.0
    %1079 = vmatpush1.msra.mxu0 0.0
    %1080 = vmatprep.subr.mxu0 0.0
    %1081 = vmatpush1.msra.mxu0 0.0
    %1082 = vmatprep.subr.mxu0 0.0
    %1083 = vmatpush1.msra.mxu0 0.0
    %1084 = vmatprep.subr.mxu0 0.0
    %1085 = vmatpush1.msra.mxu0 0.0
    %1086 = vmatprep.subr.mxu0 0.0
    %1087 = vmatpush1.msra.mxu0 0.0
    %1088 = vmatprep.subr.mxu0 0.0
    %1089 = vmatpush1.msra.mxu0 0.0
    %1090 = vmatprep.subr.mxu0 0.0
    %1091 = vmatpush1.msra.mxu0 0.0
    %1092 = vmatprep.subr.mxu0 0.0
    %1093 = vmatpush1.msra.mxu0 0.0
    %1094 = vmatprep.subr.mxu0 0.0
    %1095 = vmatpush1.msra.mxu0 0.0
    %1096 = vmatprep.subr.mxu0 0.0
    %1097 = vmatpush1.msra.mxu0 0.0
    %1098 = vmatprep.subr.mxu0 0.0
    %1099 = vmatpush1.msra.mxu0 0.0
    %1100 = vmatprep.subr.mxu0 0.0
    %1101 = vmatpush1.msra.mxu0 0.0
    %1102 = vmatprep.subr.mxu0 0.0
    %1103 = vmatpush1.msra.mxu0 0.0
    %1104 = vmatprep.subr.mxu0 0.0
    %1105 = vmatpush1.msra.mxu0 0.0
    %1106 = vmatprep.subr.mxu0 0.0
    %1107 = vmatpush1.msra.mxu0 0.0
    %1108 = vmatprep.subr.mxu0 0.0
    %1109 = vmatpush1.msra.mxu0 0.0
    %1110 = vmatprep.subr.mxu0 0.0
    %1111 = vmatpush1.msra.mxu0 0.0
    %1112 = vmatprep.subr.mxu0 0.0
    %1113 = vmatpush1.msra.mxu0 0.0
    %1114 = vmatprep.subr.mxu0 0.0
    %1115 = vmatpush1.msra.mxu0 0.0
    %1116 = vmatprep.subr.mxu0 0.0
    %1117 = vmatpush1.msra.mxu0 0.0
    %1118 = vmatprep.subr.mxu0 0.0
    %1119 = vmatpush1.msra.mxu0 0.0
    %1120 = vmatprep.subr.mxu0 0.0
    %1121 = vmatpush1.msra.mxu0 0.0
    %1122 = vmatprep.subr.mxu0 0.0
    %1123 = vmatpush1.msra.mxu0 0.0
    %1124 = vmatprep.mubr.f32.mxu0 0.0
    %1125 = vmatmul.mubr.f32.gmra.mrb[0].mxu0 %v1055
    %v1126 = vpop.f32.mrb[0].mxu0
    %v1127 = vadd.f32 0.0, %v1126
    %v1128 = vpop.f32.mrb[0].mxu0
    %1129 = vmatprep.mubr.f32.mxu0 0.0
    %1130 = vmatmul.mubr.f32.gmra.mrb[0].mxu0 %v1058
    %v1131 = vpop.f32.mrb[0].mxu0
    %v1132 = vadd.f32 0.0, %v1131
    %v1133 = vpop.f32.mrb[0].mxu0
    %1134 = vdwg.mxu0
    %v1135 = vadd.f32 %v1039, %v1127
    %v1136 = vadd.f32 %v1040, %v1132
    %v1138 = vlaneseq
    %v1139 = vshrl.u32 %v1138, 7
    %v1140 = vsub.s32 0, %v1139
    %v1141 = vrot.slane %v662, %v1140
    %v1143 = vadd.f32 %v1135, %v1141
    %v1144 = vadd.f32 %v1136, %v1141
    %vm1145 = vcmp.gt.f32.partialorder %v1143, 0.0
    %vm1146 = vcmp.gt.f32.partialorder %v1144, 0.0
    %v1147 = vmul.f32 %v1143, 0.1
    %v1148 = vmul.f32 %v1144, 0.1
    %v1149 = vsel %vm1145, %v1143, %v1147
    %v1150 = vsel %vm1146, %v1144, %v1148
    %1151 = vst [vmem:[%s10] sm:$0xff] %v1149
    %1152 = vst [vmem:[%s10 + $0x8] sm:$0x7] %v1150
    %1153 = vst [vmem:[#allocation4] sm:$0x3] 0.0
    %1154 = vst [vmem:[#allocation4 + $0xd] sm:$0x3] 0.0
    %1155 = vst [vmem:[#allocation4 + $0x2] sm:$0xff] %v1149
    %1156 = vst [vmem:[#allocation4 + $0xa] sm:$0x7] %v1150
    %v1157 = vld [vmem:[%s7] sm:$0x1]
    %v1158 = vld [vmem:[#allocation4] sm:$0xff]
    %v1159 = vld [vmem:[#allocation4 + $0x8] sm:$0x7]
    %v1160 = vld [vmem:[#allocation6] sm:$0xff]
    %v1161 = vld [vmem:[#allocation6 + $0x8] sm:$0xff]
    %v1162 = vld [vmem:[#allocation6 + $0x10] sm:$0xff]
    %v1163 = vld [vmem:[#allocation6 + $0x18] sm:$0xff]
    %v1164 = vld [vmem:[#allocation6 + $0x20] sm:$0xff]
    %v1165 = vld [vmem:[#allocation6 + $0x28] sm:$0xff]
    %v1166 = vld [vmem:[#allocation6 + $0x30] sm:$0xff]
    %v1167 = vld [vmem:[#allocation6 + $0x38] sm:$0xff]
    %v1168 = vld [vmem:[#allocation6 + $0x40] sm:$0xff]
    %v1169 = vld [vmem:[#allocation6 + $0x48] sm:$0xff]
    %v1170 = vld [vmem:[#allocation6 + $0x50] sm:$0xff]
    %v1171 = vld [vmem:[#allocation6 + $0x58] sm:$0xff]
    %v1172 = vld [vmem:[#allocation6 + $0x60] sm:$0xff]
    %v1173 = vld [vmem:[#allocation6 + $0x68] sm:$0xff]
    %v1174 = vld [vmem:[#allocation6 + $0x70] sm:$0xff]
    %v1175 = vld [vmem:[#allocation6 + $0x78] sm:$0xff]
    %v1176 = vld [vmem:[#allocation4 + $0x1] sm:$0xff]
    %v1177 = vld [vmem:[#allocation4 + $0x9] sm:$0x7]
    %s1178 = scalar_lea.vmem [#allocation6], 128
    %v1179 = vld [vmem:[%s1178] sm:$0xff]
    %v1180 = vld [vmem:[%s1178 + $0x8] sm:$0xff]
    %v1181 = vld [vmem:[%s1178 + $0x10] sm:$0xff]
    %v1182 = vld [vmem:[%s1178 + $0x18] sm:$0xff]
    %v1183 = vld [vmem:[%s1178 + $0x20] sm:$0xff]
    %v1184 = vld [vmem:[%s1178 + $0x28] sm:$0xff]
    %v1185 = vld [vmem:[%s1178 + $0x30] sm:$0xff]
    %v1186 = vld [vmem:[%s1178 + $0x38] sm:$0xff]
    %v1187 = vld [vmem:[%s1178 + $0x40] sm:$0xff]
    %v1188 = vld [vmem:[%s1178 + $0x48] sm:$0xff]
    %v1189 = vld [vmem:[%s1178 + $0x50] sm:$0xff]
    %v1190 = vld [vmem:[%s1178 + $0x58] sm:$0xff]
    %v1191 = vld [vmem:[%s1178 + $0x60] sm:$0xff]
    %v1192 = vld [vmem:[%s1178 + $0x68] sm:$0xff]
    %v1193 = vld [vmem:[%s1178 + $0x70] sm:$0xff]
    %v1194 = vld [vmem:[%s1178 + $0x78] sm:$0xff]
    %1195 = vmatprep.subr.mxu0 0.0
    %1196 = vmatpush1.msra.mxu0 %v1179
    %1197 = vmatprep.subr.mxu0 0.0
    %1198 = vmatpush1.msra.mxu0 %v1180
    %1199 = vmatprep.subr.mxu0 0.0
    %1200 = vmatpush1.msra.mxu0 %v1181
    %1201 = vmatprep.subr.mxu0 0.0
    %1202 = vmatpush1.msra.mxu0 %v1182
    %1203 = vmatprep.subr.mxu0 0.0
    %1204 = vmatpush1.msra.mxu0 %v1183
    %1205 = vmatprep.subr.mxu0 0.0
    %1206 = vmatpush1.msra.mxu0 %v1184
    %1207 = vmatprep.subr.mxu0 0.0
    %1208 = vmatpush1.msra.mxu0 %v1185
    %1209 = vmatprep.subr.mxu0 0.0
    %1210 = vmatpush1.msra.mxu0 %v1186
    %1211 = vmatprep.subr.mxu0 0.0
    %1212 = vmatpush1.msra.mxu0 %v1187
    %1213 = vmatprep.subr.mxu0 0.0
    %1214 = vmatpush1.msra.mxu0 %v1188
    %1215 = vmatprep.subr.mxu0 0.0
    %1216 = vmatpush1.msra.mxu0 %v1189
    %1217 = vmatprep.subr.mxu0 0.0
    %1218 = vmatpush1.msra.mxu0 %v1190
    %1219 = vmatprep.subr.mxu0 0.0
    %1220 = vmatpush1.msra.mxu0 %v1191
    %1221 = vmatprep.subr.mxu0 0.0
    %1222 = vmatpush1.msra.mxu0 %v1192
    %1223 = vmatprep.subr.mxu0 0.0
    %1224 = vmatpush1.msra.mxu0 %v1193
    %1225 = vmatprep.subr.mxu0 0.0
    %1226 = vmatpush1.msra.mxu0 %v1194
    %1227 = vmatprep.subr.mxu0 0.0
    %1228 = vmatpush1.msra.mxu0 0.0
    %1229 = vmatprep.subr.mxu0 0.0
    %1230 = vmatpush1.msra.mxu0 0.0
    %1231 = vmatprep.subr.mxu0 0.0
    %1232 = vmatpush1.msra.mxu0 0.0
    %1233 = vmatprep.subr.mxu0 0.0
    %1234 = vmatpush1.msra.mxu0 0.0
    %1235 = vmatprep.subr.mxu0 0.0
    %1236 = vmatpush1.msra.mxu0 0.0
    %1237 = vmatprep.subr.mxu0 0.0
    %1238 = vmatpush1.msra.mxu0 0.0
    %1239 = vmatprep.subr.mxu0 0.0
    %1240 = vmatpush1.msra.mxu0 0.0
    %1241 = vmatprep.subr.mxu0 0.0
    %1242 = vmatpush1.msra.mxu0 0.0
    %1243 = vmatprep.subr.mxu0 0.0
    %1244 = vmatpush1.msra.mxu0 0.0
    %1245 = vmatprep.subr.mxu0 0.0
    %1246 = vmatpush1.msra.mxu0 0.0
    %1247 = vmatprep.subr.mxu0 0.0
    %1248 = vmatpush1.msra.mxu0 0.0
    %1249 = vmatprep.subr.mxu0 0.0
    %1250 = vmatpush1.msra.mxu0 0.0
    %1251 = vmatprep.subr.mxu0 0.0
    %1252 = vmatpush1.msra.mxu0 0.0
    %1253 = vmatprep.subr.mxu0 0.0
    %1254 = vmatpush1.msra.mxu0 0.0
    %1255 = vmatprep.subr.mxu0 0.0
    %1256 = vmatpush1.msra.mxu0 0.0
    %1257 = vmatprep.subr.mxu0 0.0
    %1258 = vmatpush1.msra.mxu0 0.0
    %1259 = vmatprep.mubr.f32.mxu0 0.0
    %1260 = vmatmul.mubr.f32.gmra.mrb[0].mxu0 %v1176
    %v1261 = vpop.f32.mrb[0].mxu0
    %v1262 = vadd.f32 0.0, %v1261
    %v1263 = vpop.f32.mrb[0].mxu0
    %1264 = vmatprep.mubr.f32.mxu0 0.0
    %1265 = vmatmul.mubr.f32.gmra.mrb[0].mxu0 %v1177
    %v1266 = vpop.f32.mrb[0].mxu0
    %v1267 = vadd.f32 0.0, %v1266
    %v1268 = vpop.f32.mrb[0].mxu0
    %1269 = vdwg.mxu0
    %1270 = vmatprep.subr.mxu0 0.0
    %1271 = vmatpush1.msra.mxu0 %v1160
    %1272 = vmatprep.subr.mxu0 0.0
    %1273 = vmatpush1.msra.mxu0 %v1161
    %1274 = vmatprep.subr.mxu0 0.0
    %1275 = vmatpush1.msra.mxu0 %v1162
    %1276 = vmatprep.subr.mxu0 0.0
    %1277 = vmatpush1.msra.mxu0 %v1163
    %1278 = vmatprep.subr.mxu0 0.0
    %1279 = vmatpush1.msra.mxu0 %v1164
    %1280 = vmatprep.subr.mxu0 0.0
    %1281 = vmatpush1.msra.mxu0 %v1165
    %1282 = vmatprep.subr.mxu0 0.0
    %1283 = vmatpush1.msra.mxu0 %v1166
    %1284 = vmatprep.subr.mxu0 0.0
    %1285 = vmatpush1.msra.mxu0 %v1167
    %1286 = vmatprep.subr.mxu0 0.0
    %1287 = vmatpush1.msra.mxu0 %v1168
    %1288 = vmatprep.subr.mxu0 0.0
    %1289 = vmatpush1.msra.mxu0 %v1169
    %1290 = vmatprep.subr.mxu0 0.0
    %1291 = vmatpush1.msra.mxu0 %v1170
    %1292 = vmatprep.subr.mxu0 0.0
    %1293 = vmatpush1.msra.mxu0 %v1171
    %1294 = vmatprep.subr.mxu0 0.0
    %1295 = vmatpush1.msra.mxu0 %v1172
    %1296 = vmatprep.subr.mxu0 0.0
    %1297 = vmatpush1.msra.mxu0 %v1173
    %1298 = vmatprep.subr.mxu0 0.0
    %1299 = vmatpush1.msra.mxu0 %v1174
    %1300 = vmatprep.subr.mxu0 0.0
    %1301 = vmatpush1.msra.mxu0 %v1175
    %1302 = vmatprep.subr.mxu0 0.0
    %1303 = vmatpush1.msra.mxu0 0.0
    %1304 = vmatprep.subr.mxu0 0.0
    %1305 = vmatpush1.msra.mxu0 0.0
    %1306 = vmatprep.subr.mxu0 0.0
    %1307 = vmatpush1.msra.mxu0 0.0
    %1308 = vmatprep.subr.mxu0 0.0
    %1309 = vmatpush1.msra.mxu0 0.0
    %1310 = vmatprep.subr.mxu0 0.0
    %1311 = vmatpush1.msra.mxu0 0.0
    %1312 = vmatprep.subr.mxu0 0.0
    %1313 = vmatpush1.msra.mxu0 0.0
    %1314 = vmatprep.subr.mxu0 0.0
    %1315 = vmatpush1.msra.mxu0 0.0
    %1316 = vmatprep.subr.mxu0 0.0
    %1317 = vmatpush1.msra.mxu0 0.0
    %1318 = vmatprep.subr.mxu0 0.0
    %1319 = vmatpush1.msra.mxu0 0.0
    %1320 = vmatprep.subr.mxu0 0.0
    %1321 = vmatpush1.msra.mxu0 0.0
    %1322 = vmatprep.subr.mxu0 0.0
    %1323 = vmatpush1.msra.mxu0 0.0
    %1324 = vmatprep.subr.mxu0 0.0
    %1325 = vmatpush1.msra.mxu0 0.0
    %1326 = vmatprep.subr.mxu0 0.0
    %1327 = vmatpush1.msra.mxu0 0.0
    %1328 = vmatprep.subr.mxu0 0.0
    %1329 = vmatpush1.msra.mxu0 0.0
    %1330 = vmatprep.subr.mxu0 0.0
    %1331 = vmatpush1.msra.mxu0 0.0
    %1332 = vmatprep.subr.mxu0 0.0
    %1333 = vmatpush1.msra.mxu0 0.0
    %1334 = vmatprep.mubr.f32.mxu0 0.0
    %1335 = vmatmul.mubr.f32.gmra.mrb[0].mxu0 %v1158
    %v1336 = vpop.f32.mrb[0].mxu0
    %v1337 = vadd.f32 %v1262, %v1336
    %v1338 = vpop.f32.mrb[0].mxu0
    %1339 = vmatprep.mubr.f32.mxu0 0.0
    %1340 = vmatmul.mubr.f32.gmra.mrb[0].mxu0 %v1159
    %v1341 = vpop.f32.mrb[0].mxu0
    %v1342 = vadd.f32 %v1267, %v1341
    %v1343 = vpop.f32.mrb[0].mxu0
    %1344 = vdwg.mxu0
    %v1345 = vld [vmem:[#allocation4 + $0x2] sm:$0xff]
    %v1346 = vld [vmem:[#allocation4 + $0xa] sm:$0x7]
    %s1347 = scalar_lea.vmem [#allocation6], 256
    %v1348 = vld [vmem:[%s1347] sm:$0xff]
    %v1349 = vld [vmem:[%s1347 + $0x8] sm:$0xff]
    %v1350 = vld [vmem:[%s1347 + $0x10] sm:$0xff]
    %v1351 = vld [vmem:[%s1347 + $0x18] sm:$0xff]
    %v1352 = vld [vmem:[%s1347 + $0x20] sm:$0xff]
    %v1353 = vld [vmem:[%s1347 + $0x28] sm:$0xff]
    %v1354 = vld [vmem:[%s1347 + $0x30] sm:$0xff]
    %v1355 = vld [vmem:[%s1347 + $0x38] sm:$0xff]
    %v1356 = vld [vmem:[%s1347 + $0x40] sm:$0xff]
    %v1357 = vld [vmem:[%s1347 + $0x48] sm:$0xff]
    %v1358 = vld [vmem:[%s1347 + $0x50] sm:$0xff]
    %v1359 = vld [vmem:[%s1347 + $0x58] sm:$0xff]
    %v1360 = vld [vmem:[%s1347 + $0x60] sm:$0xff]
    %v1361 = vld [vmem:[%s1347 + $0x68] sm:$0xff]
    %v1362 = vld [vmem:[%s1347 + $0x70] sm:$0xff]
    %v1363 = vld [vmem:[%s1347 + $0x78] sm:$0xff]
    %1364 = vmatprep.subr.mxu0 0.0
    %1365 = vmatpush1.msra.mxu0 %v1348
    %1366 = vmatprep.subr.mxu0 0.0
    %1367 = vmatpush1.msra.mxu0 %v1349
    %1368 = vmatprep.subr.mxu0 0.0
    %1369 = vmatpush1.msra.mxu0 %v1350
    %1370 = vmatprep.subr.mxu0 0.0
    %1371 = vmatpush1.msra.mxu0 %v1351
    %1372 = vmatprep.subr.mxu0 0.0
    %1373 = vmatpush1.msra.mxu0 %v1352
    %1374 = vmatprep.subr.mxu0 0.0
    %1375 = vmatpush1.msra.mxu0 %v1353
    %1376 = vmatprep.subr.mxu0 0.0
    %1377 = vmatpush1.msra.mxu0 %v1354
    %1378 = vmatprep.subr.mxu0 0.0
    %1379 = vmatpush1.msra.mxu0 %v1355
    %1380 = vmatprep.subr.mxu0 0.0
    %1381 = vmatpush1.msra.mxu0 %v1356
    %1382 = vmatprep.subr.mxu0 0.0
    %1383 = vmatpush1.msra.mxu0 %v1357
    %1384 = vmatprep.subr.mxu0 0.0
    %1385 = vmatpush1.msra.mxu0 %v1358
    %1386 = vmatprep.subr.mxu0 0.0
    %1387 = vmatpush1.msra.mxu0 %v1359
    %1388 = vmatprep.subr.mxu0 0.0
    %1389 = vmatpush1.msra.mxu0 %v1360
    %1390 = vmatprep.subr.mxu0 0.0
    %1391 = vmatpush1.msra.mxu0 %v1361
    %1392 = vmatprep.subr.mxu0 0.0
    %1393 = vmatpush1.msra.mxu0 %v1362
    %1394 = vmatprep.subr.mxu0 0.0
    %1395 = vmatpush1.msra.mxu0 %v1363
    %1396 = vmatprep.subr.mxu0 0.0
    %1397 = vmatpush1.msra.mxu0 0.0
    %1398 = vmatprep.subr.mxu0 0.0
    %1399 = vmatpush1.msra.mxu0 0.0
    %1400 = vmatprep.subr.mxu0 0.0
    %1401 = vmatpush1.msra.mxu0 0.0
    %1402 = vmatprep.subr.mxu0 0.0
    %1403 = vmatpush1.msra.mxu0 0.0
    %1404 = vmatprep.subr.mxu0 0.0
    %1405 = vmatpush1.msra.mxu0 0.0
    %1406 = vmatprep.subr.mxu0 0.0
    %1407 = vmatpush1.msra.mxu0 0.0
    %1408 = vmatprep.subr.mxu0 0.0
    %1409 = vmatpush1.msra.mxu0 0.0
    %1410 = vmatprep.subr.mxu0 0.0
    %1411 = vmatpush1.msra.mxu0 0.0
    %1412 = vmatprep.subr.mxu0 0.0
    %1413 = vmatpush1.msra.mxu0 0.0
    %1414 = vmatprep.subr.mxu0 0.0
    %1415 = vmatpush1.msra.mxu0 0.0
    %1416 = vmatprep.subr.mxu0 0.0
    %1417 = vmatpush1.msra.mxu0 0.0
    %1418 = vmatprep.subr.mxu0 0.0
    %1419 = vmatpush1.msra.mxu0 0.0
    %1420 = vmatprep.subr.mxu0 0.0
    %1421 = vmatpush1.msra.mxu0 0.0
    %1422 = vmatprep.subr.mxu0 0.0
    %1423 = vmatpush1.msra.mxu0 0.0
    %1424 = vmatprep.subr.mxu0 0.0
    %1425 = vmatpush1.msra.mxu0 0.0
    %1426 = vmatprep.subr.mxu0 0.0
    %1427 = vmatpush1.msra.mxu0 0.0
    %1428 = vmatprep.mubr.f32.mxu0 0.0
    %1429 = vmatmul.mubr.f32.gmra.mrb[0].mxu0 %v1345
    %v1430 = vpop.f32.mrb[0].mxu0
    %v1431 = vadd.f32 0.0, %v1430
    %v1432 = vpop.f32.mrb[0].mxu0
    %1433 = vmatprep.mubr.f32.mxu0 0.0
    %1434 = vmatmul.mubr.f32.gmra.mrb[0].mxu0 %v1346
    %v1435 = vpop.f32.mrb[0].mxu0
    %v1436 = vadd.f32 0.0, %v1435
    %v1437 = vpop.f32.mrb[0].mxu0
    %1438 = vdwg.mxu0
    %v1439 = vadd.f32 %v1337, %v1431
    %v1440 = vadd.f32 %v1342, %v1436
    %v1441 = vld [vmem:[#allocation4 + $0x3] sm:$0xff]
    %v1442 = vld [vmem:[#allocation4 + $0xb] sm:$0x7]
    %s1443 = scalar_lea.vmem [#allocation6], 384
    %v1444 = vld [vmem:[%s1443] sm:$0xff]
    %v1445 = vld [vmem:[%s1443 + $0x8] sm:$0xff]
    %v1446 = vld [vmem:[%s1443 + $0x10] sm:$0xff]
    %v1447 = vld [vmem:[%s1443 + $0x18] sm:$0xff]
    %v1448 = vld [vmem:[%s1443 + $0x20] sm:$0xff]
    %v1449 = vld [vmem:[%s1443 + $0x28] sm:$0xff]
    %v1450 = vld [vmem:[%s1443 + $0x30] sm:$0xff]
    %v1451 = vld [vmem:[%s1443 + $0x38] sm:$0xff]
    %v1452 = vld [vmem:[%s1443 + $0x40] sm:$0xff]
    %v1453 = vld [vmem:[%s1443 + $0x48] sm:$0xff]
    %v1454 = vld [vmem:[%s1443 + $0x50] sm:$0xff]
    %v1455 = vld [vmem:[%s1443 + $0x58] sm:$0xff]
    %v1456 = vld [vmem:[%s1443 + $0x60] sm:$0xff]
    %v1457 = vld [vmem:[%s1443 + $0x68] sm:$0xff]
    %v1458 = vld [vmem:[%s1443 + $0x70] sm:$0xff]
    %v1459 = vld [vmem:[%s1443 + $0x78] sm:$0xff]
    %1460 = vmatprep.subr.mxu0 0.0
    %1461 = vmatpush1.msra.mxu0 %v1444
    %1462 = vmatprep.subr.mxu0 0.0
    %1463 = vmatpush1.msra.mxu0 %v1445
    %1464 = vmatprep.subr.mxu0 0.0
    %1465 = vmatpush1.msra.mxu0 %v1446
    %1466 = vmatprep.subr.mxu0 0.0
    %1467 = vmatpush1.msra.mxu0 %v1447
    %1468 = vmatprep.subr.mxu0 0.0
    %1469 = vmatpush1.msra.mxu0 %v1448
    %1470 = vmatprep.subr.mxu0 0.0
    %1471 = vmatpush1.msra.mxu0 %v1449
    %1472 = vmatprep.subr.mxu0 0.0
    %1473 = vmatpush1.msra.mxu0 %v1450
    %1474 = vmatprep.subr.mxu0 0.0
    %1475 = vmatpush1.msra.mxu0 %v1451
    %1476 = vmatprep.subr.mxu0 0.0
    %1477 = vmatpush1.msra.mxu0 %v1452
    %1478 = vmatprep.subr.mxu0 0.0
    %1479 = vmatpush1.msra.mxu0 %v1453
    %1480 = vmatprep.subr.mxu0 0.0
    %1481 = vmatpush1.msra.mxu0 %v1454
    %1482 = vmatprep.subr.mxu0 0.0
    %1483 = vmatpush1.msra.mxu0 %v1455
    %1484 = vmatprep.subr.mxu0 0.0
    %1485 = vmatpush1.msra.mxu0 %v1456
    %1486 = vmatprep.subr.mxu0 0.0
    %1487 = vmatpush1.msra.mxu0 %v1457
    %1488 = vmatprep.subr.mxu0 0.0
    %1489 = vmatpush1.msra.mxu0 %v1458
    %1490 = vmatprep.subr.mxu0 0.0
    %1491 = vmatpush1.msra.mxu0 %v1459
    %1492 = vmatprep.subr.mxu0 0.0
    %1493 = vmatpush1.msra.mxu0 0.0
    %1494 = vmatprep.subr.mxu0 0.0
    %1495 = vmatpush1.msra.mxu0 0.0
    %1496 = vmatprep.subr.mxu0 0.0
    %1497 = vmatpush1.msra.mxu0 0.0
    %1498 = vmatprep.subr.mxu0 0.0
    %1499 = vmatpush1.msra.mxu0 0.0
    %1500 = vmatprep.subr.mxu0 0.0
    %1501 = vmatpush1.msra.mxu0 0.0
    %1502 = vmatprep.subr.mxu0 0.0
    %1503 = vmatpush1.msra.mxu0 0.0
    %1504 = vmatprep.subr.mxu0 0.0
    %1505 = vmatpush1.msra.mxu0 0.0
    %1506 = vmatprep.subr.mxu0 0.0
    %1507 = vmatpush1.msra.mxu0 0.0
    %1508 = vmatprep.subr.mxu0 0.0
    %1509 = vmatpush1.msra.mxu0 0.0
    %1510 = vmatprep.subr.mxu0 0.0
    %1511 = vmatpush1.msra.mxu0 0.0
    %1512 = vmatprep.subr.mxu0 0.0
    %1513 = vmatpush1.msra.mxu0 0.0
    %1514 = vmatprep.subr.mxu0 0.0
    %1515 = vmatpush1.msra.mxu0 0.0
    %1516 = vmatprep.subr.mxu0 0.0
    %1517 = vmatpush1.msra.mxu0 0.0
    %1518 = vmatprep.subr.mxu0 0.0
    %1519 = vmatpush1.msra.mxu0 0.0
    %1520 = vmatprep.subr.mxu0 0.0
    %1521 = vmatpush1.msra.mxu0 0.0
    %1522 = vmatprep.subr.mxu0 0.0
    %1523 = vmatpush1.msra.mxu0 0.0
    %1524 = vmatprep.mubr.f32.mxu0 0.0
    %1525 = vmatmul.mubr.f32.gmra.mrb[0].mxu0 %v1441
    %v1526 = vpop.f32.mrb[0].mxu0
    %v1527 = vadd.f32 0.0, %v1526
    %v1528 = vpop.f32.mrb[0].mxu0
    %1529 = vmatprep.mubr.f32.mxu0 0.0
    %1530 = vmatmul.mubr.f32.gmra.mrb[0].mxu0 %v1442
    %v1531 = vpop.f32.mrb[0].mxu0
    %v1532 = vadd.f32 0.0, %v1531
    %v1533 = vpop.f32.mrb[0].mxu0
    %1534 = vdwg.mxu0
    %v1535 = vadd.f32 %v1439, %v1527
    %v1536 = vadd.f32 %v1440, %v1532
    %v1537 = vld [vmem:[#allocation4 + $0x4] sm:$0xff]
    %v1538 = vld [vmem:[#allocation4 + $0xc] sm:$0x7]
    %s1539 = scalar_lea.vmem [#allocation6], 512
    %v1540 = vld [vmem:[%s1539] sm:$0xff]
    %v1541 = vld [vmem:[%s1539 + $0x8] sm:$0xff]
    %v1542 = vld [vmem:[%s1539 + $0x10] sm:$0xff]
    %v1543 = vld [vmem:[%s1539 + $0x18] sm:$0xff]
    %v1544 = vld [vmem:[%s1539 + $0x20] sm:$0xff]
    %v1545 = vld [vmem:[%s1539 + $0x28] sm:$0xff]
    %v1546 = vld [vmem:[%s1539 + $0x30] sm:$0xff]
    %v1547 = vld [vmem:[%s1539 + $0x38] sm:$0xff]
    %v1548 = vld [vmem:[%s1539 + $0x40] sm:$0xff]
    %v1549 = vld [vmem:[%s1539 + $0x48] sm:$0xff]
    %v1550 = vld [vmem:[%s1539 + $0x50] sm:$0xff]
    %v1551 = vld [vmem:[%s1539 + $0x58] sm:$0xff]
    %v1552 = vld [vmem:[%s1539 + $0x60] sm:$0xff]
    %v1553 = vld [vmem:[%s1539 + $0x68] sm:$0xff]
    %v1554 = vld [vmem:[%s1539 + $0x70] sm:$0xff]
    %v1555 = vld [vmem:[%s1539 + $0x78] sm:$0xff]
    %1556 = vmatprep.subr.mxu0 0.0
    %1557 = vmatpush1.msra.mxu0 %v1540
    %1558 = vmatprep.subr.mxu0 0.0
    %1559 = vmatpush1.msra.mxu0 %v1541
    %1560 = vmatprep.subr.mxu0 0.0
    %1561 = vmatpush1.msra.mxu0 %v1542
    %1562 = vmatprep.subr.mxu0 0.0
    %1563 = vmatpush1.msra.mxu0 %v1543
    %1564 = vmatprep.subr.mxu0 0.0
    %1565 = vmatpush1.msra.mxu0 %v1544
    %1566 = vmatprep.subr.mxu0 0.0
    %1567 = vmatpush1.msra.mxu0 %v1545
    %1568 = vmatprep.subr.mxu0 0.0
    %1569 = vmatpush1.msra.mxu0 %v1546
    %1570 = vmatprep.subr.mxu0 0.0
    %1571 = vmatpush1.msra.mxu0 %v1547
    %1572 = vmatprep.subr.mxu0 0.0
    %1573 = vmatpush1.msra.mxu0 %v1548
    %1574 = vmatprep.subr.mxu0 0.0
    %1575 = vmatpush1.msra.mxu0 %v1549
    %1576 = vmatprep.subr.mxu0 0.0
    %1577 = vmatpush1.msra.mxu0 %v1550
    %1578 = vmatprep.subr.mxu0 0.0
    %1579 = vmatpush1.msra.mxu0 %v1551
    %1580 = vmatprep.subr.mxu0 0.0
    %1581 = vmatpush1.msra.mxu0 %v1552
    %1582 = vmatprep.subr.mxu0 0.0
    %1583 = vmatpush1.msra.mxu0 %v1553
    %1584 = vmatprep.subr.mxu0 0.0
    %1585 = vmatpush1.msra.mxu0 %v1554
    %1586 = vmatprep.subr.mxu0 0.0
    %1587 = vmatpush1.msra.mxu0 %v1555
    %1588 = vmatprep.subr.mxu0 0.0
    %1589 = vmatpush1.msra.mxu0 0.0
    %1590 = vmatprep.subr.mxu0 0.0
    %1591 = vmatpush1.msra.mxu0 0.0
    %1592 = vmatprep.subr.mxu0 0.0
    %1593 = vmatpush1.msra.mxu0 0.0
    %1594 = vmatprep.subr.mxu0 0.0
    %1595 = vmatpush1.msra.mxu0 0.0
    %1596 = vmatprep.subr.mxu0 0.0
    %1597 = vmatpush1.msra.mxu0 0.0
    %1598 = vmatprep.subr.mxu0 0.0
    %1599 = vmatpush1.msra.mxu0 0.0
    %1600 = vmatprep.subr.mxu0 0.0
    %1601 = vmatpush1.msra.mxu0 0.0
    %1602 = vmatprep.subr.mxu0 0.0
    %1603 = vmatpush1.msra.mxu0 0.0
    %1604 = vmatprep.subr.mxu0 0.0
    %1605 = vmatpush1.msra.mxu0 0.0
    %1606 = vmatprep.subr.mxu0 0.0
    %1607 = vmatpush1.msra.mxu0 0.0
    %1608 = vmatprep.subr.mxu0 0.0
    %1609 = vmatpush1.msra.mxu0 0.0
    %1610 = vmatprep.subr.mxu0 0.0
    %1611 = vmatpush1.msra.mxu0 0.0
    %1612 = vmatprep.subr.mxu0 0.0
    %1613 = vmatpush1.msra.mxu0 0.0
    %1614 = vmatprep.subr.mxu0 0.0
    %1615 = vmatpush1.msra.mxu0 0.0
    %1616 = vmatprep.subr.mxu0 0.0
    %1617 = vmatpush1.msra.mxu0 0.0
    %1618 = vmatprep.subr.mxu0 0.0
    %1619 = vmatpush1.msra.mxu0 0.0
    %1620 = vmatprep.mubr.f32.mxu0 0.0
    %1621 = vmatmul.mubr.f32.gmra.mrb[0].mxu0 %v1537
    %v1622 = vpop.f32.mrb[0].mxu0
    %v1623 = vadd.f32 0.0, %v1622
    %v1624 = vpop.f32.mrb[0].mxu0
    %1625 = vmatprep.mubr.f32.mxu0 0.0
    %1626 = vmatmul.mubr.f32.gmra.mrb[0].mxu0 %v1538
    %v1627 = vpop.f32.mrb[0].mxu0
    %v1628 = vadd.f32 0.0, %v1627
    %v1629 = vpop.f32.mrb[0].mxu0
    %1630 = vdwg.mxu0
    %v1631 = vadd.f32 %v1535, %v1623
    %v1632 = vadd.f32 %v1536, %v1628
    %v1634 = vlaneseq
    %v1635 = vshrl.u32 %v1634, 7
    %v1636 = vsub.s32 0, %v1635
    %v1637 = vrot.slane %v1157, %v1636
    %v1639 = vadd.f32 %v1631, %v1637
    %v1640 = vadd.f32 %v1632, %v1637
    %vm1641 = vcmp.gt.f32.partialorder %v1639, 0.0
    %vm1642 = vcmp.gt.f32.partialorder %v1640, 0.0
    %v1643 = vmul.f32 %v1639, 0.1
    %v1644 = vmul.f32 %v1640, 0.1
    %v1645 = vsel %vm1641, %v1639, %v1643
    %v1646 = vsel %vm1642, %v1640, %v1644
    %1647 = vst [vmem:[%s11] sm:$0xff] %v1645
    %1648 = vst [vmem:[%s11 + $0x8] sm:$0x7] %v1646
    %1649 = vst [vmem:[#allocation5] sm:$0x1] 0.0
    %1650 = vst [vmem:[#allocation5 + $0xc] sm:$0x1] 0.0
    %1651 = vst [vmem:[#allocation5 + $0x1] sm:$0xff] %v1645
    %1652 = vst [vmem:[#allocation5 + $0x9] sm:$0x7] %v1646
    %v1653 = vld [vmem:[%s8] sm:$0x1]
    %v1654 = vld [vmem:[#allocation5] sm:$0xff]
    %v1655 = vld [vmem:[#allocation5 + $0x8] sm:$0x7]
    %v1656 = vld [vmem:[%s4] sm:$0xff]
    %v1657 = vld [vmem:[%s4 + $0x8] sm:$0xff]
    %v1658 = vld [vmem:[%s4 + $0x10] sm:$0xff]
    %v1659 = vld [vmem:[%s4 + $0x18] sm:$0xff]
    %v1660 = vld [vmem:[%s4 + $0x20] sm:$0xff]
    %v1661 = vld [vmem:[%s4 + $0x28] sm:$0xff]
    %v1662 = vld [vmem:[%s4 + $0x30] sm:$0xff]
    %v1663 = vld [vmem:[%s4 + $0x38] sm:$0xff]
    %v1664 = vld [vmem:[%s4 + $0x40] sm:$0xff]
    %v1665 = vld [vmem:[%s4 + $0x48] sm:$0xff]
    %v1666 = vld [vmem:[%s4 + $0x50] sm:$0xff]
    %v1667 = vld [vmem:[%s4 + $0x58] sm:$0xff]
    %v1668 = vld [vmem:[%s4 + $0x60] sm:$0xff]
    %v1669 = vld [vmem:[%s4 + $0x68] sm:$0xff]
    %v1670 = vld [vmem:[%s4 + $0x70] sm:$0xff]
    %v1671 = vld [vmem:[%s4 + $0x78] sm:$0xff]
    %v1672 = vld [vmem:[#allocation5 + $0x1] sm:$0xff]
    %v1673 = vld [vmem:[#allocation5 + $0x9] sm:$0x7]
    %s1674 = scalar_lea.vmem %s4, 128
    %v1675 = vld [vmem:[%s1674] sm:$0xff]
    %v1676 = vld [vmem:[%s1674 + $0x8] sm:$0xff]
    %v1677 = vld [vmem:[%s1674 + $0x10] sm:$0xff]
    %v1678 = vld [vmem:[%s1674 + $0x18] sm:$0xff]
    %v1679 = vld [vmem:[%s1674 + $0x20] sm:$0xff]
    %v1680 = vld [vmem:[%s1674 + $0x28] sm:$0xff]
    %v1681 = vld [vmem:[%s1674 + $0x30] sm:$0xff]
    %v1682 = vld [vmem:[%s1674 + $0x38] sm:$0xff]
    %v1683 = vld [vmem:[%s1674 + $0x40] sm:$0xff]
    %v1684 = vld [vmem:[%s1674 + $0x48] sm:$0xff]
    %v1685 = vld [vmem:[%s1674 + $0x50] sm:$0xff]
    %v1686 = vld [vmem:[%s1674 + $0x58] sm:$0xff]
    %v1687 = vld [vmem:[%s1674 + $0x60] sm:$0xff]
    %v1688 = vld [vmem:[%s1674 + $0x68] sm:$0xff]
    %v1689 = vld [vmem:[%s1674 + $0x70] sm:$0xff]
    %v1690 = vld [vmem:[%s1674 + $0x78] sm:$0xff]
    %1691 = vmatprep.subr.mxu0 0.0
    %1692 = vmatpush1.msra.mxu0 %v1675
    %1693 = vmatprep.subr.mxu0 0.0
    %1694 = vmatpush1.msra.mxu0 %v1676
    %1695 = vmatprep.subr.mxu0 0.0
    %1696 = vmatpush1.msra.mxu0 %v1677
    %1697 = vmatprep.subr.mxu0 0.0
    %1698 = vmatpush1.msra.mxu0 %v1678
    %1699 = vmatprep.subr.mxu0 0.0
    %1700 = vmatpush1.msra.mxu0 %v1679
    %1701 = vmatprep.subr.mxu0 0.0
    %1702 = vmatpush1.msra.mxu0 %v1680
    %1703 = vmatprep.subr.mxu0 0.0
    %1704 = vmatpush1.msra.mxu0 %v1681
    %1705 = vmatprep.subr.mxu0 0.0
    %1706 = vmatpush1.msra.mxu0 %v1682
    %1707 = vmatprep.subr.mxu0 0.0
    %1708 = vmatpush1.msra.mxu0 %v1683
    %1709 = vmatprep.subr.mxu0 0.0
    %1710 = vmatpush1.msra.mxu0 %v1684
    %1711 = vmatprep.subr.mxu0 0.0
    %1712 = vmatpush1.msra.mxu0 %v1685
    %1713 = vmatprep.subr.mxu0 0.0
    %1714 = vmatpush1.msra.mxu0 %v1686
    %1715 = vmatprep.subr.mxu0 0.0
    %1716 = vmatpush1.msra.mxu0 %v1687
    %1717 = vmatprep.subr.mxu0 0.0
    %1718 = vmatpush1.msra.mxu0 %v1688
    %1719 = vmatprep.subr.mxu0 0.0
    %1720 = vmatpush1.msra.mxu0 %v1689
    %1721 = vmatprep.subr.mxu0 0.0
    %1722 = vmatpush1.msra.mxu0 %v1690
    %1723 = vmatprep.subr.mxu0 0.0
    %1724 = vmatpush1.msra.mxu0 0.0
    %1725 = vmatprep.subr.mxu0 0.0
    %1726 = vmatpush1.msra.mxu0 0.0
    %1727 = vmatprep.subr.mxu0 0.0
    %1728 = vmatpush1.msra.mxu0 0.0
    %1729 = vmatprep.subr.mxu0 0.0
    %1730 = vmatpush1.msra.mxu0 0.0
    %1731 = vmatprep.subr.mxu0 0.0
    %1732 = vmatpush1.msra.mxu0 0.0
    %1733 = vmatprep.subr.mxu0 0.0
    %1734 = vmatpush1.msra.mxu0 0.0
    %1735 = vmatprep.subr.mxu0 0.0
    %1736 = vmatpush1.msra.mxu0 0.0
    %1737 = vmatprep.subr.mxu0 0.0
    %1738 = vmatpush1.msra.mxu0 0.0
    %1739 = vmatprep.subr.mxu0 0.0
    %1740 = vmatpush1.msra.mxu0 0.0
    %1741 = vmatprep.subr.mxu0 0.0
    %1742 = vmatpush1.msra.mxu0 0.0
    %1743 = vmatprep.subr.mxu0 0.0
    %1744 = vmatpush1.msra.mxu0 0.0
    %1745 = vmatprep.subr.mxu0 0.0
    %1746 = vmatpush1.msra.mxu0 0.0
    %1747 = vmatprep.subr.mxu0 0.0
    %1748 = vmatpush1.msra.mxu0 0.0
    %1749 = vmatprep.subr.mxu0 0.0
    %1750 = vmatpush1.msra.mxu0 0.0
    %1751 = vmatprep.subr.mxu0 0.0
    %1752 = vmatpush1.msra.mxu0 0.0
    %1753 = vmatprep.subr.mxu0 0.0
    %1754 = vmatpush1.msra.mxu0 0.0
    %1755 = vmatprep.mubr.f32.mxu0 0.0
    %1756 = vmatmul.mubr.f32.gmra.mrb[0].mxu0 %v1672
    %v1757 = vpop.f32.mrb[0].mxu0
    %v1758 = vadd.f32 0.0, %v1757
    %v1759 = vpop.f32.mrb[0].mxu0
    %1760 = vmatprep.mubr.f32.mxu0 0.0
    %1761 = vmatmul.mubr.f32.gmra.mrb[0].mxu0 %v1673
    %v1762 = vpop.f32.mrb[0].mxu0
    %v1763 = vadd.f32 0.0, %v1762
    %v1764 = vpop.f32.mrb[0].mxu0
    %1765 = vdwg.mxu0
    %1766 = vmatprep.subr.mxu0 0.0
    %1767 = vmatpush1.msra.mxu0 %v1656
    %1768 = vmatprep.subr.mxu0 0.0
    %1769 = vmatpush1.msra.mxu0 %v1657
    %1770 = vmatprep.subr.mxu0 0.0
    %1771 = vmatpush1.msra.mxu0 %v1658
    %1772 = vmatprep.subr.mxu0 0.0
    %1773 = vmatpush1.msra.mxu0 %v1659
    %1774 = vmatprep.subr.mxu0 0.0
    %1775 = vmatpush1.msra.mxu0 %v1660
    %1776 = vmatprep.subr.mxu0 0.0
    %1777 = vmatpush1.msra.mxu0 %v1661
    %1778 = vmatprep.subr.mxu0 0.0
    %1779 = vmatpush1.msra.mxu0 %v1662
    %1780 = vmatprep.subr.mxu0 0.0
    %1781 = vmatpush1.msra.mxu0 %v1663
    %1782 = vmatprep.subr.mxu0 0.0
    %1783 = vmatpush1.msra.mxu0 %v1664
    %1784 = vmatprep.subr.mxu0 0.0
    %1785 = vmatpush1.msra.mxu0 %v1665
    %1786 = vmatprep.subr.mxu0 0.0
    %1787 = vmatpush1.msra.mxu0 %v1666
    %1788 = vmatprep.subr.mxu0 0.0
    %1789 = vmatpush1.msra.mxu0 %v1667
    %1790 = vmatprep.subr.mxu0 0.0
    %1791 = vmatpush1.msra.mxu0 %v1668
    %1792 = vmatprep.subr.mxu0 0.0
    %1793 = vmatpush1.msra.mxu0 %v1669
    %1794 = vmatprep.subr.mxu0 0.0
    %1795 = vmatpush1.msra.mxu0 %v1670
    %1796 = vmatprep.subr.mxu0 0.0
    %1797 = vmatpush1.msra.mxu0 %v1671
    %1798 = vmatprep.subr.mxu0 0.0
    %1799 = vmatpush1.msra.mxu0 0.0
    %1800 = vmatprep.subr.mxu0 0.0
    %1801 = vmatpush1.msra.mxu0 0.0
    %1802 = vmatprep.subr.mxu0 0.0
    %1803 = vmatpush1.msra.mxu0 0.0
    %1804 = vmatprep.subr.mxu0 0.0
    %1805 = vmatpush1.msra.mxu0 0.0
    %1806 = vmatprep.subr.mxu0 0.0
    %1807 = vmatpush1.msra.mxu0 0.0
    %1808 = vmatprep.subr.mxu0 0.0
    %1809 = vmatpush1.msra.mxu0 0.0
    %1810 = vmatprep.subr.mxu0 0.0
    %1811 = vmatpush1.msra.mxu0 0.0
    %1812 = vmatprep.subr.mxu0 0.0
    %1813 = vmatpush1.msra.mxu0 0.0
    %1814 = vmatprep.subr.mxu0 0.0
    %1815 = vmatpush1.msra.mxu0 0.0
    %1816 = vmatprep.subr.mxu0 0.0
    %1817 = vmatpush1.msra.mxu0 0.0
    %1818 = vmatprep.subr.mxu0 0.0
    %1819 = vmatpush1.msra.mxu0 0.0
    %1820 = vmatprep.subr.mxu0 0.0
    %1821 = vmatpush1.msra.mxu0 0.0
    %1822 = vmatprep.subr.mxu0 0.0
    %1823 = vmatpush1.msra.mxu0 0.0
    %1824 = vmatprep.subr.mxu0 0.0
    %1825 = vmatpush1.msra.mxu0 0.0
    %1826 = vmatprep.subr.mxu0 0.0
    %1827 = vmatpush1.msra.mxu0 0.0
    %1828 = vmatprep.subr.mxu0 0.0
    %1829 = vmatpush1.msra.mxu0 0.0
    %1830 = vmatprep.mubr.f32.mxu0 0.0
    %1831 = vmatmul.mubr.f32.gmra.mrb[0].mxu0 %v1654
    %v1832 = vpop.f32.mrb[0].mxu0
    %v1833 = vadd.f32 %v1758, %v1832
    %v1834 = vpop.f32.mrb[0].mxu0
    %1835 = vmatprep.mubr.f32.mxu0 0.0
    %1836 = vmatmul.mubr.f32.gmra.mrb[0].mxu0 %v1655
    %v1837 = vpop.f32.mrb[0].mxu0
    %v1838 = vadd.f32 %v1763, %v1837
    %v1839 = vpop.f32.mrb[0].mxu0
    %1840 = vdwg.mxu0
    %v1841 = vld [vmem:[#allocation5 + $0x2] sm:$0xff]
    %v1842 = vld [vmem:[#allocation5 + $0xa] sm:$0x7]
    %s1843 = scalar_lea.vmem %s4, 256
    %v1844 = vld [vmem:[%s1843] sm:$0xff]
    %v1845 = vld [vmem:[%s1843 + $0x8] sm:$0xff]
    %v1846 = vld [vmem:[%s1843 + $0x10] sm:$0xff]
    %v1847 = vld [vmem:[%s1843 + $0x18] sm:$0xff]
    %v1848 = vld [vmem:[%s1843 + $0x20] sm:$0xff]
    %v1849 = vld [vmem:[%s1843 + $0x28] sm:$0xff]
    %v1850 = vld [vmem:[%s1843 + $0x30] sm:$0xff]
    %v1851 = vld [vmem:[%s1843 + $0x38] sm:$0xff]
    %v1852 = vld [vmem:[%s1843 + $0x40] sm:$0xff]
    %v1853 = vld [vmem:[%s1843 + $0x48] sm:$0xff]
    %v1854 = vld [vmem:[%s1843 + $0x50] sm:$0xff]
    %v1855 = vld [vmem:[%s1843 + $0x58] sm:$0xff]
    %v1856 = vld [vmem:[%s1843 + $0x60] sm:$0xff]
    %v1857 = vld [vmem:[%s1843 + $0x68] sm:$0xff]
    %v1858 = vld [vmem:[%s1843 + $0x70] sm:$0xff]
    %v1859 = vld [vmem:[%s1843 + $0x78] sm:$0xff]
    %1860 = vmatprep.subr.mxu0 0.0
    %1861 = vmatpush1.msra.mxu0 %v1844
    %1862 = vmatprep.subr.mxu0 0.0
    %1863 = vmatpush1.msra.mxu0 %v1845
    %1864 = vmatprep.subr.mxu0 0.0
    %1865 = vmatpush1.msra.mxu0 %v1846
    %1866 = vmatprep.subr.mxu0 0.0
    %1867 = vmatpush1.msra.mxu0 %v1847
    %1868 = vmatprep.subr.mxu0 0.0
    %1869 = vmatpush1.msra.mxu0 %v1848
    %1870 = vmatprep.subr.mxu0 0.0
    %1871 = vmatpush1.msra.mxu0 %v1849
    %1872 = vmatprep.subr.mxu0 0.0
    %1873 = vmatpush1.msra.mxu0 %v1850
    %1874 = vmatprep.subr.mxu0 0.0
    %1875 = vmatpush1.msra.mxu0 %v1851
    %1876 = vmatprep.subr.mxu0 0.0
    %1877 = vmatpush1.msra.mxu0 %v1852
    %1878 = vmatprep.subr.mxu0 0.0
    %1879 = vmatpush1.msra.mxu0 %v1853
    %1880 = vmatprep.subr.mxu0 0.0
    %1881 = vmatpush1.msra.mxu0 %v1854
    %1882 = vmatprep.subr.mxu0 0.0
    %1883 = vmatpush1.msra.mxu0 %v1855
    %1884 = vmatprep.subr.mxu0 0.0
    %1885 = vmatpush1.msra.mxu0 %v1856
    %1886 = vmatprep.subr.mxu0 0.0
    %1887 = vmatpush1.msra.mxu0 %v1857
    %1888 = vmatprep.subr.mxu0 0.0
    %1889 = vmatpush1.msra.mxu0 %v1858
    %1890 = vmatprep.subr.mxu0 0.0
    %1891 = vmatpush1.msra.mxu0 %v1859
    %1892 = vmatprep.subr.mxu0 0.0
    %1893 = vmatpush1.msra.mxu0 0.0
    %1894 = vmatprep.subr.mxu0 0.0
    %1895 = vmatpush1.msra.mxu0 0.0
    %1896 = vmatprep.subr.mxu0 0.0
    %1897 = vmatpush1.msra.mxu0 0.0
    %1898 = vmatprep.subr.mxu0 0.0
    %1899 = vmatpush1.msra.mxu0 0.0
    %1900 = vmatprep.subr.mxu0 0.0
    %1901 = vmatpush1.msra.mxu0 0.0
    %1902 = vmatprep.subr.mxu0 0.0
    %1903 = vmatpush1.msra.mxu0 0.0
    %1904 = vmatprep.subr.mxu0 0.0
    %1905 = vmatpush1.msra.mxu0 0.0
    %1906 = vmatprep.subr.mxu0 0.0
    %1907 = vmatpush1.msra.mxu0 0.0
    %1908 = vmatprep.subr.mxu0 0.0
    %1909 = vmatpush1.msra.mxu0 0.0
    %1910 = vmatprep.subr.mxu0 0.0
    %1911 = vmatpush1.msra.mxu0 0.0
    %1912 = vmatprep.subr.mxu0 0.0
    %1913 = vmatpush1.msra.mxu0 0.0
    %1914 = vmatprep.subr.mxu0 0.0
    %1915 = vmatpush1.msra.mxu0 0.0
    %1916 = vmatprep.subr.mxu0 0.0
    %1917 = vmatpush1.msra.mxu0 0.0
    %1918 = vmatprep.subr.mxu0 0.0
    %1919 = vmatpush1.msra.mxu0 0.0
    %1920 = vmatprep.subr.mxu0 0.0
    %1921 = vmatpush1.msra.mxu0 0.0
    %1922 = vmatprep.subr.mxu0 0.0
    %1923 = vmatpush1.msra.mxu0 0.0
    %1924 = vmatprep.mubr.f32.mxu0 0.0
    %1925 = vmatmul.mubr.f32.gmra.mrb[0].mxu0 %v1841
    %v1926 = vpop.f32.mrb[0].mxu0
    %v1927 = vadd.f32 0.0, %v1926
    %v1928 = vpop.f32.mrb[0].mxu0
    %1929 = vmatprep.mubr.f32.mxu0 0.0
    %1930 = vmatmul.mubr.f32.gmra.mrb[0].mxu0 %v1842
    %v1931 = vpop.f32.mrb[0].mxu0
    %v1932 = vadd.f32 0.0, %v1931
    %v1933 = vpop.f32.mrb[0].mxu0
    %1934 = vdwg.mxu0
    %v1935 = vadd.f32 %v1833, %v1927
    %v1936 = vadd.f32 %v1838, %v1932
    %v1938 = vlaneseq
    %v1939 = vshrl.u32 %v1938, 7
    %v1940 = vsub.s32 0, %v1939
    %v1941 = vrot.slane %v1653, %v1940
    %v1943 = vadd.f32 %v1935, %v1941
    %v1944 = vadd.f32 %v1936, %v1941
    %1945 = vst.msk [vmem:[%s12] sm:$0xff] %vm67, %v1943
    %vm1946 = vcmask 59392
    %1947 = vst.msk [vmem:[%s12 + $0x8] sm:$0x7] %vm1946, %v1944
    // Predicated region
    $region42: #{tpu_custom_call.1} parent=1 // pred_check
      _
    $region43: #{tpu_custom_call.1} parent=1 // pred_check_branch
      %1949 = sbr.rel (0) target = $region45
    $region44: #{tpu_custom_call.1} parent=1 // pred_region
      %s1951 = ssub.s32 512, 512
      %1952 = vsyncadd [#allocation8], %s1951
      %s1953 = sshll.u32 [#allocation9], 4
      %s1954 = int_to_ptr.vmem [resolvable:$true] %s1953
      %1959 = dma.vmem_to_hbm [thread:$0]  %s1954, 512, %s9, [#allocation8], 128, 128, 8
    $region45: #{tpu_custom_call.1} parent=1 // pred_fallthru
      _
    // Predicated region
    $region46: #{tpu_custom_call.1} parent=1 // pred_check
      _
    $region47: #{tpu_custom_call.1} parent=1 // pred_check_branch
      %1961 = sbr.rel (0) target = $region49
    $region48: #{tpu_custom_call.1} parent=1 // pred_region
      _
    $region49: #{tpu_custom_call.1} parent=1 // pred_fallthru
      _
    // Predicated region
    $region50: #{tpu_custom_call.1} parent=1 // pred_check
      _
    $region51: #{tpu_custom_call.1} parent=1 // pred_check_branch
      %1963 = sbr.rel (0) target = $region53
    $region52: #{tpu_custom_call.1} parent=1 // pred_region
      _
    $region53: #{tpu_custom_call.1} parent=1 // pred_fallthru
      _
    // Predicated region
    $region54: #{tpu_custom_call.1} parent=1 // pred_check
      _
    $region55: #{tpu_custom_call.1} parent=1 // pred_check_branch
      %1965 = sbr.rel (0) target = $region57
    $region56: #{tpu_custom_call.1} parent=1 // pred_region
      _
    $region57: #{tpu_custom_call.1} parent=1 // pred_fallthru
      _
    // Predicated region
    $region58: #{tpu_custom_call.1} parent=1 // pred_check
      _
    $region59: #{tpu_custom_call.1} parent=1 // pred_check_branch
      %1967 = sbr.rel (0) target = $region61
    $region60: #{tpu_custom_call.1} parent=1 // pred_region
      %1968 = dma.done [#allocation8], 512
    $region61: #{tpu_custom_call.1} parent=1 // pred_fallthru
      _
    // Predicated region
    $region62: #{tpu_custom_call.1} parent=1 // pred_check
      _
    $region63: #{tpu_custom_call.1} parent=1 // pred_check_branch
      %1970 = sbr.rel (0) target = $region65
    $region64: #{tpu_custom_call.1} parent=1 // pred_region
      _
    $region65: #{tpu_custom_call.1} parent=1 // pred_fallthru
      _
    // Predicated region
    $region66: #{tpu_custom_call.1} parent=1 // pred_check
      _
    $region67: #{tpu_custom_call.1} parent=1 // pred_check_branch
      %1972 = sbr.rel (0) target = $region69
    $region68: #{tpu_custom_call.1} parent=1 // pred_region
      _
    $region69: #{tpu_custom_call.1} parent=1 // pred_fallthru
      _
    // Predicated region
    $region70: #{tpu_custom_call.1} parent=1 // pred_check
      _
    $region71: #{tpu_custom_call.1} parent=1 // pred_check_branch
      %1974 = sbr.rel (0) target = $region73
    $region72: #{tpu_custom_call.1} parent=1 // pred_region
      _
    $region73: #{tpu_custom_call.1} parent=1 // pred_fallthru
      _
    %1975 = vsyncpa [#allocation7], 1
    %1976 = vsyncpa [#allocation8], 1

</llo_original>
